<compile_context>
chip_gen: v7x
topology: tpu7x:2x2x1
jax: 0.10.0
libtpu: 0.0.40
codegen_flags: <defaults>
</compile_context>

<pallas_src>
import functools

import jax
import jax.numpy as jnp
from jax.experimental import pallas as pl
from jax.experimental.pallas import tpu as pltpu


# ---------------------------------------------------------------------------
# Batch-block selection (generation aware).
# ---------------------------------------------------------------------------
def _tensorcores_per_chip():
    """2 on v7x (two TensorCores per chip), 1 on v5e/v6e and older."""
    try:
        kind = jax.devices()[0].device_kind.lower()
    except Exception:
        return 1
    return 2 if ("v7" in kind or "7x" in kind) else 1


def _default_batch_block(B, K, T, E):
    """Pick bb (batch elements per grid step).

    * one grid step on single-TensorCore chips (per-step overhead ~0.35us
      dominates at small sizes),
    * >= 2 "parallel" steps on v7x so both TensorCores get work,
    * capped so the f32 (bb,K,K,E) pairwise slab + (bb,K,K,T) attention
      intermediate stay well inside the smallest scoped-VMEM default.
    """
    tcs = _tensorcores_per_chip()
    per_batch_bytes = 4 * K * K * (E + T) + 4 * K * (2 * E + 2) + 8 * K * T
    budget = 8 * 1024 * 1024                       # conservative for v5e (16 MiB scoped)
    bb_cap = max(1, budget // max(per_batch_bytes, 1))

    bb = B // tcs if (tcs > 1 and B % tcs == 0) else B
    bb = max(1, min(bb, bb_cap, B))

    def ok(n):
        # bb must divide B; when bb < B the leading block dim of the flattened
        # x operand (bb*K) must keep the (8,128) tiling rule.
        return B % n == 0 and (n == B or (n * K) % 8 == 0)

    while bb > 1 and not ok(bb):
        bb -= 1
    return bb if ok(bb) else B


# ---------------------------------------------------------------------------
# One-time parameter preparation (hoisted out of the per-call path).
# ---------------------------------------------------------------------------
def prepare_space_attention_params(w, b_lin, a, bias, alpha,
                                    compute_dtype=jnp.bfloat16):
    """Fuse/transpose the Linear weight and pack the small parameters.

    w: (E, 2T) lin_transform.weight, b_lin: (E,), a: (E,), bias: (K, K).
    Returns:
      wt_ext: (T, 2E+2) = [W1^T | W2^T | alpha*W1^T a | alpha*W2^T a]  (compute_dtype)
      params: (2+K, max(E,K)) f32 -- row 0: b_lin, row 1: (1-alpha)*a,
              rows 2..: bias + alpha*(b_lin . a)
    """
    w = w.astype(jnp.float32)
    b_lin = b_lin.astype(jnp.float32)
    a = a.astype(jnp.float32)
    bias = bias.astype(jnp.float32)

    E, two_T = w.shape
    T = two_T // 2
    K = bias.shape[0]

    w1t = w[:, :T].T                                   # (T, E)
    w2t = w[:, T:].T                                   # (T, E)
    c1 = alpha * (w1t @ a)                             # (T,) per-node scalar term (i side)
    c2 = alpha * (w2t @ a)                             # (T,) per-node scalar term (j side)
    wt_ext = jnp.concatenate([w1t, w2t, c1[:, None], c2[:, None]],
                             axis=1).astype(compute_dtype)   # (T, 2E+2)

    C = max(E, K)
    params = jnp.zeros((2 + K, C), jnp.float32)
    params = params.at[0, :E].set(b_lin)
    params = params.at[1, :E].set((1.0 - alpha) * a)
    params = params.at[2:, :K].set(bias + alpha * jnp.dot(b_lin, a))
    return wt_ext, params


# ---------------------------------------------------------------------------
# Kernel.
# ---------------------------------------------------------------------------
def _space_attention_kernel(E, K, x2d_ref, x3_ref, wt_ref, params_ref, o_ref):
    # x2d_ref:    (bb*K, T)      flattened batch block (compute dtype, MXU operand)
    # x3_ref:     (bb, K, T)     same data, natural layout (for the attention apply)
    # wt_ref:     (T, 2E+2)      [W1^T | W2^T | a*W1^T a | a*W2^T a]
    # params_ref: (2+K, C)  f32  row 0: b_lin, row 1: (1-alpha)*a, rows 2..: bias_eff
    # o_ref:      (bb, K, T) f32
    x2d = x2d_ref[...]
    wt = wt_ref[...]
    params = params_ref[...]
    blin = params[0, :E]                               # (E,)
    a_eff = params[1, :E]                              # (E,)  = (1-alpha)*a
    bias_eff = params[2:2 + K, :K]                     # (K,K) = bias + alpha*(b_lin.a)

    bbK = x2d.shape[0]
    bb = bbK // K

    # Single fused MXU matmul (bf16 operands, f32 accumulation):
    #   uv = x @ [W1^T | W2^T | alpha*W1^T a | alpha*W2^T a]
    uv = jnp.dot(x2d, wt, preferred_element_type=jnp.float32)    # (bb*K, 2E+2)

    u = (uv[:, :E] + blin).reshape(bb, K, 1, E)        # x_i @ W1^T + b_lin
    v = uv[:, E:2 * E].reshape(bb, 1, K, E)            # x_j @ W2^T
    pre = u + v                                        # (bb,K,K,E) linear pre-activation
    su = uv[:, 2 * E:2 * E + 1].reshape(bb, K, 1)      # alpha * (x_i@W1^T + b_lin).a - const
    sv = uv[:, 2 * E + 1:2 * E + 2].reshape(bb, 1, K)  # alpha * (x_j@W2^T).a

    # LeakyReLU(pre).a == alpha*(pre.a) + (1-alpha)*(relu(pre).a)
    #   alpha*(pre.a) = su + sv + alpha*(b_lin.a)   (constant folded into bias_eff)
    e = su + sv + jnp.sum(jnp.maximum(pre, 0.0) * a_eff, axis=-1) + bias_eff   # (bb,K,K)

    # softmax over j (exact division; use pl.reciprocal(..., approx=True) only
    # if ~1e-3 deviation from the PyTorch module is acceptable)
    e = e - jnp.max(e, axis=-1, keepdims=True)
    p = jnp.exp(e)
    attn = p / jnp.sum(p, axis=-1, keepdims=True)
    # nn.Dropout(attention) is identity in eval mode.

    # attention @ x on the VPU: h[b,i,t] = sum_j attn[b,i,j] * x[b,j,t]
    # (K=8, T=16 -> a per-batch MXU matmul would be pure fill/drain latency)
    x3 = x3_ref[...].astype(jnp.float32)                          # (bb, K, T)
    h = jnp.sum(attn[:, :, :, None] * x3[:, None, :, :], axis=2)  # (bb, K, T)
    o_ref[...] = jax.nn.sigmoid(h).astype(o_ref.dtype)


# ---------------------------------------------------------------------------
# Wrapper.
# ---------------------------------------------------------------------------
def space_attention_pallas(x, wt_ext, params, *, batch_block=None,
                           compute_dtype=jnp.bfloat16):
    """x: (B, K, T).  wt_ext/params from prepare_space_attention_params()."""
    B, K, T = x.shape
    E = (wt_ext.shape[1] - 2) // 2
    assert wt_ext.shape == (T, 2 * E + 2)
    assert params.shape[0] == 2 + K

    bb = batch_block if batch_block is not None else _default_batch_block(B, K, T, E)
    assert B % bb == 0, "batch_block must divide the batch size"
    assert bb == B or (bb * K) % 8 == 0, "bb*K must be a multiple of 8 when bb < B"
    steps = B // bb

    # Wrapper-side layout choices (free in XLA) so the kernel does no reshapes:
    #   x2d -> MXU operand, x3 -> attention apply, output kept in natural layout.
    xc = x.astype(compute_dtype)
    x2d = xc.reshape(B * K, T)

    kern = functools.partial(_space_attention_kernel, E, K)
    out = pl.pallas_call(
        kern,
        out_shape=jax.ShapeDtypeStruct((B, K, T), jnp.float32),
        grid_spec=pltpu.PrefetchScalarGridSpec(
            num_scalar_prefetch=0,
            grid=(steps,),
            in_specs=[
                pl.BlockSpec((bb * K, T), lambda s: (s, 0)),          # x flattened
                pl.BlockSpec((bb, K, T), lambda s: (s, 0, 0)),        # x natural
                pl.BlockSpec((T, 2 * E + 2), lambda s: (0, 0)),       # fused weight
                pl.BlockSpec(params.shape, lambda s: (0, 0)),         # packed params
            ],
            out_specs=pl.BlockSpec((bb, K, T), lambda s: (s, 0, 0)),
        ),
        compiler_params=pltpu.CompilerParams(
            dimension_semantics=("parallel",)),
    )(x2d, xc, wt_ext, params)
    return out


# ---------------------------------------------------------------------------
# Pure-JAX reference (mirror of the PyTorch forward, eval / non-prior path).
# ---------------------------------------------------------------------------
def space_attention_ref(x, w, b_lin, a, bias, alpha):
    B, K, T = x.shape
    rep = jnp.repeat(x, K, axis=1)                 # repeat_interleave(K, dim=1)
    alt = jnp.tile(x, (1, K, 1))                   # repeat(1, K, 1)
    comb = jnp.concatenate([rep, alt], axis=2).reshape(B, K, K, 2 * T)
    lin = comb @ w.T + b_lin
    act = jnp.where(lin >= 0, lin, alpha * lin)
    e = (act @ a.reshape(-1, 1))[..., 0] + bias
    attn = jax.nn.softmax(e, axis=2)
    return jax.nn.sigmoid(attn @ x)


# TODO(synk): use_prior_embed=True path (utils.LearnFeatureGraph / topk adjacency
# masking) and training-mode dropout on the attention matrix are not implemented;
# eval-mode, non-prior-embed forward only.


if __name__ == "__main__":
    # Small, module-consistent shapes.
    B = 4            # batch
    K = 8            # n_features (graph nodes)
    T = 16           # time_step
    E = 2 * T        # embed_dim (embed_dim=None -> time_step, then *2)
    alpha = 0.2      # LeakyReLU negative slope
    # dropout=0.2 and topk are unused on the inference / non-prior-embed path.

    key = jax.random.PRNGKey(0)
    kx, kw, kb, ka, kbias = jax.random.split(key, 5)

    x = jax.random.normal(kx, (B, K, T), dtype=jnp.float32)

    # Deterministic synthetic parameters (shapes from __init__).
    lim_w = (6.0 / (E + 2 * T)) ** 0.5
    w = jax.random.uniform(kw, (E, 2 * T), minval=-lim_w, maxval=lim_w,
                           dtype=jnp.float32)                # lin_transform.weight
    b_lin = jax.random.uniform(kb, (E,), minval=-0.1, maxval=0.1,
                               dtype=jnp.float32)            # lin_transform.bias
    lim_a = 1.414 * (6.0 / (E + 1)) ** 0.5
    a = jax.random.uniform(ka, (E,), minval=-lim_a, maxval=lim_a,
                           dtype=jnp.float32)                # self.a (E, 1) squeezed
    bias = 0.01 * jax.random.normal(kbias, (K, K), dtype=jnp.float32)  # self.bias

    ref = space_attention_ref(x, w, b_lin, a, bias, alpha)

    # --- f32 path: tight check of the restructured math ----------------------
    wt_f32, params_f32 = prepare_space_attention_params(
        w, b_lin, a, bias, alpha, compute_dtype=jnp.float32)
    out_f32 = space_attention_pallas(x, wt_f32, params_f32,
                                     compute_dtype=jnp.float32)
    out_f32 = jax.block_until_ready(out_f32)
    assert out_f32.shape == (B, K, T)
    assert jnp.allclose(out_f32, ref, atol=2e-3, rtol=2e-3), "f32 mismatch vs reference"

    # --- bf16 MXU-operand path (default, per perf review) --------------------
    # Parameter prep is done ONCE outside the jitted forward (hoisted).
    wt_bf, params_bf = prepare_space_attention_params(
        w, b_lin, a, bias, alpha, compute_dtype=jnp.bfloat16)
    fwd = jax.jit(functools.partial(space_attention_pallas,
                                    compute_dtype=jnp.bfloat16))
    out_bf = jax.block_until_ready(fwd(x, wt_bf, params_bf))
    assert out_bf.shape == (B, K, T)
    # Tolerance accounts for bf16 rounding of the MXU operands.
    assert jnp.allclose(out_bf, ref, atol=3e-2, rtol=3e-2), "bf16 mismatch vs reference"

    print("KERNEL_OK")
</pallas_src>

<mosaic_0001>
module attributes {stable_mosaic.version = 11 : i64} {
  func.func @_space_attention_kernel(%arg0: i32, %arg1: memref<32x16xf32, #tpu.memory_space<vmem>>, %arg2: memref<4x8x16xf32, #tpu.memory_space<vmem>>, %arg3: memref<16x66xf32, #tpu.memory_space<vmem>>, %arg4: memref<10x32xf32, #tpu.memory_space<vmem>>, %arg5: memref<4x8x16xf32, #tpu.memory_space<vmem>>) attributes {dimension_semantics = [#tpu.dimension_semantics<parallel>], iteration_bounds = array<i64: 1>, scalar_prefetch = 0 : i64, scratch_operands = 0 : i64, tpu.core_type = #tpu.core_type<tc>, window_params = [{transform_indices = @transform_0, window_bounds = array<i64: 32, 16>}, {transform_indices = @transform_1, window_bounds = array<i64: 4, 8, 16>}, {pipeline_mode = #tpu.pipeline_mode<synchronous>, transform_indices = @transform_2, window_bounds = array<i64: 16, 66>}, {pipeline_mode = #tpu.pipeline_mode<synchronous>, transform_indices = @transform_3, window_bounds = array<i64: 10, 32>}, {transform_indices = @transform_4, window_bounds = array<i64: 4, 8, 16>}]} {
    %c0 = arith.constant 0 : index
    %c0_0 = arith.constant 0 : index
    %0 = vector.load %arg1[%c0, %c0_0] : memref<32x16xf32, #tpu.memory_space<vmem>>, vector<32x16xf32>
    %c0_1 = arith.constant 0 : index
    %c0_2 = arith.constant 0 : index
    %1 = vector.load %arg3[%c0_1, %c0_2] : memref<16x66xf32, #tpu.memory_space<vmem>>, vector<16x66xf32>
    %c0_3 = arith.constant 0 : index
    %c0_4 = arith.constant 0 : index
    %2 = vector.load %arg4[%c0_3, %c0_4] : memref<10x32xf32, #tpu.memory_space<vmem>>, vector<10x32xf32>
    %3 = vector.extract_strided_slice %2 {offsets = [0, 0], sizes = [1, 32], strides = [1, 1]} : vector<10x32xf32> to vector<1x32xf32>
    %4 = vector.shape_cast %3 : vector<1x32xf32> to vector<32xf32>
    %5 = vector.extract_strided_slice %2 {offsets = [1, 0], sizes = [1, 32], strides = [1, 1]} : vector<10x32xf32> to vector<1x32xf32>
    %6 = vector.shape_cast %5 : vector<1x32xf32> to vector<32xf32>
    %7 = vector.extract_strided_slice %2 {offsets = [2, 0], sizes = [8, 8], strides = [1, 1]} : vector<10x32xf32> to vector<8x8xf32>
    %cst = arith.constant dense<0.000000e+00> : vector<32x66xf32>
    %8 = tpu.matmul %0, %1, %cst {dimension_numbers = #tpu.dot_dimension_numbers<[1], [0], [0], [1], [0, 0, 1, 1], [], []>} : vector<32x16xf32>, vector<16x66xf32>, vector<32x66xf32> -> vector<32x66xf32>
    %9 = vector.extract_strided_slice %8 {offsets = [0, 0], sizes = [32, 32], strides = [1, 1]} : vector<32x66xf32> to vector<32x32xf32>
    %10 = vector.shape_cast %4 : vector<32xf32> to vector<1x32xf32>
    %11 = vector.broadcast %10 : vector<1x32xf32> to vector<32x32xf32>
    %12 = arith.addf %9, %11 : vector<32x32xf32>
    %13 = vector.shape_cast %12 : vector<32x32xf32> to vector<4x8x1x32xf32>
    %14 = vector.extract_strided_slice %8 {offsets = [0, 32], sizes = [32, 32], strides = [1, 1]} : vector<32x66xf32> to vector<32x32xf32>
    %15 = vector.shape_cast %14 : vector<32x32xf32> to vector<4x1x8x32xf32>
    %16 = vector.broadcast %13 : vector<4x8x1x32xf32> to vector<4x8x8x32xf32>
    %17 = vector.broadcast %15 : vector<4x1x8x32xf32> to vector<4x8x8x32xf32>
    %18 = arith.addf %16, %17 : vector<4x8x8x32xf32>
    %19 = vector.extract_strided_slice %8 {offsets = [0, 64], sizes = [32, 1], strides = [1, 1]} : vector<32x66xf32> to vector<32x1xf32>
    %20 = vector.shape_cast %19 : vector<32x1xf32> to vector<4x8x1xf32>
    %21 = vector.extract_strided_slice %8 {offsets = [0, 65], sizes = [32, 1], strides = [1, 1]} : vector<32x66xf32> to vector<32x1xf32>
    %22 = vector.shape_cast %21 : vector<32x1xf32> to vector<4x1x8xf32>
    %23 = vector.broadcast %20 : vector<4x8x1xf32> to vector<4x8x8xf32>
    %24 = vector.broadcast %22 : vector<4x1x8xf32> to vector<4x8x8xf32>
    %25 = arith.addf %23, %24 : vector<4x8x8xf32>
    %cst_5 = arith.constant 0.000000e+00 : f32
    %26 = vector.broadcast %cst_5 : f32 to vector<4x8x8x32xf32>
    %27 = arith.maximumf %18, %26 : vector<4x8x8x32xf32>
    %28 = vector.shape_cast %6 : vector<32xf32> to vector<1x1x1x32xf32>
    %29 = vector.broadcast %28 : vector<1x1x1x32xf32> to vector<4x8x8x32xf32>
    %30 = arith.mulf %27, %29 : vector<4x8x8x32xf32>
    %cst_6 = arith.constant dense<0.000000e+00> : vector<4x8x8xf32>
    %31 = vector.multi_reduction <add>, %30, %cst_6 [3] : vector<4x8x8x32xf32> to vector<4x8x8xf32>
    %32 = arith.addf %25, %31 : vector<4x8x8xf32>
    %33 = vector.shape_cast %7 : vector<8x8xf32> to vector<1x8x8xf32>
    %34 = vector.broadcast %33 : vector<1x8x8xf32> to vector<4x8x8xf32>
    %35 = arith.addf %32, %34 : vector<4x8x8xf32>
    %cst_7 = arith.constant dense<0xFF800000> : vector<4x8xf32>
    %36 = vector.multi_reduction <maximumf>, %35, %cst_7 [2] : vector<4x8x8xf32> to vector<4x8xf32>
    %37 = vector.shape_cast %36 : vector<4x8xf32> to vector<4x8x1xf32>
    %38 = vector.broadcast %37 : vector<4x8x1xf32> to vector<4x8x8xf32>
    %39 = arith.subf %35, %38 : vector<4x8x8xf32>
    %40 = math.exp %39 : vector<4x8x8xf32>
    %cst_8 = arith.constant dense<0.000000e+00> : vector<4x8xf32>
    %41 = vector.multi_reduction <add>, %40, %cst_8 [2] : vector<4x8x8xf32> to vector<4x8xf32>
    %42 = vector.shape_cast %41 : vector<4x8xf32> to vector<4x8x1xf32>
    %43 = vector.broadcast %42 : vector<4x8x1xf32> to vector<4x8x8xf32>
    %44 = arith.divf %40, %43 : vector<4x8x8xf32>
    %c0_9 = arith.constant 0 : index
    %c0_10 = arith.constant 0 : index
    %c0_11 = arith.constant 0 : index
    %45 = vector.load %arg2[%c0_9, %c0_10, %c0_11] : memref<4x8x16xf32, #tpu.memory_space<vmem>>, vector<4x8x16xf32>
    %46 = vector.shape_cast %44 : vector<4x8x8xf32> to vector<4x8x8x1xf32>
    %47 = vector.shape_cast %45 : vector<4x8x16xf32> to vector<4x1x8x16xf32>
    %48 = vector.broadcast %46 : vector<4x8x8x1xf32> to vector<4x8x8x16xf32>
    %49 = vector.broadcast %47 : vector<4x1x8x16xf32> to vector<4x8x8x16xf32>
    %50 = arith.mulf %48, %49 : vector<4x8x8x16xf32>
    %cst_12 = arith.constant dense<0.000000e+00> : vector<4x8x16xf32>
    %51 = vector.multi_reduction <add>, %50, %cst_12 [2] : vector<4x8x8x16xf32> to vector<4x8x16xf32>
    %52 = arith.negf %51 : vector<4x8x16xf32>
    %53 = math.exp %52 : vector<4x8x16xf32>
    %cst_13 = arith.constant 1.000000e+00 : f32
    %54 = vector.broadcast %cst_13 : f32 to vector<4x8x16xf32>
    %55 = arith.addf %54, %53 : vector<4x8x16xf32>
    %56 = arith.divf %54, %55 : vector<4x8x16xf32>
    %c0_14 = arith.constant 0 : index
    %c0_15 = arith.constant 0 : index
    %c0_16 = arith.constant 0 : index
    %57 = vector.load %arg5[%c0_14, %c0_15, %c0_16] : memref<4x8x16xf32, #tpu.memory_space<vmem>>, vector<4x8x16xf32>
    tpu.vector_store %arg5[%c0_14, %c0_15, %c0_16], %56 {strides = array<i32>} : memref<4x8x16xf32, #tpu.memory_space<vmem>>, vector<4x8x16xf32>,
    return
  }
  func.func @transform_0(%arg0: i32) -> (i32, i32) {
    %c0_i32 = arith.constant 0 : i32
    %c0_i32_0 = arith.constant 0 : i32
    return %arg0, %c0_i32 : i32, i32
  }
  func.func @transform_1(%arg0: i32) -> (i32, i32, i32) {
    %c0_i32 = arith.constant 0 : i32
    %c0_i32_0 = arith.constant 0 : i32
    %c0_i32_1 = arith.constant 0 : i32
    return %arg0, %c0_i32, %c0_i32_0 : i32, i32, i32
  }
  func.func @transform_2(%arg0: i32) -> (i32, i32) {
    %c0_i32 = arith.constant 0 : i32
    %c0_i32_0 = arith.constant 0 : i32
    %c0_i32_1 = arith.constant 0 : i32
    return %c0_i32, %c0_i32_0 : i32, i32
  }
  func.func @transform_3(%arg0: i32) -> (i32, i32) {
    %c0_i32 = arith.constant 0 : i32
    %c0_i32_0 = arith.constant 0 : i32
    %c0_i32_1 = arith.constant 0 : i32
    return %c0_i32, %c0_i32_0 : i32, i32
  }
  func.func @transform_4(%arg0: i32) -> (i32, i32, i32) {
    %c0_i32 = arith.constant 0 : i32
    %c0_i32_0 = arith.constant 0 : i32
    %c0_i32_1 = arith.constant 0 : i32
    return %arg0, %c0_i32, %c0_i32_0 : i32, i32, i32
  }
}

</mosaic_0001>

<llo_original>
// kernel: tpu_custom_call.1
$region0: #{tpu_custom_call.1}
  #allocation0 [shape = 'u32[]', space=smem, size = 0x4, offset = 0x4, fixed_abs, tag = 'smem constant byte address 0x4 - core index']
  #allocation1 [shape = 'u32[144,128]{1,0:T(1,128)}', space=vmem, size = 0x12000, scoped, tag = 'internal scratch']
  %s0 = inlined_call_operand.vmem [shape: f32[32,16], index: 0, kind: input, shape index: {}]
  %s1 = inlined_call_operand.vmem [shape: f32[4,8,16], index: 1, kind: input, shape index: {}]
  %s2 = inlined_call_operand.vmem [shape: f32[16,66], index: 2, kind: input, shape index: {}]
  %s3 = inlined_call_operand.hbm [shape: f32[10,32], index: 3, kind: input, shape index: {}]
  %s4 = inlined_call_operand.hbm [shape: f32[4,8,16], index: 4, kind: output, shape index: {}]
  %s5 = sld [smem:[#allocation0]]
  $region30: #{tpu_custom_call.1} parent=0
    _
  %s7 = ssub.s32 1, %s5
  %s8 = scalar_select 0, %s7, %s5
  $region1: #{tpu_custom_call.1} parent=0
    #allocation2 [shape = 'u8[8192]{0}', space=vmem, size = 0x2000, scoped, tag = 'input window, operand 3, single buffered']
    #allocation3 [shape = 's32[1]{0}', space=sflag, size = 0x4, scoped, tag = 'scoped memory for tpu_custom_call.1']
    #allocation4 [shape = 's32[1]{0}', space=sflag, size = 0x4, scoped, tag = 'scoped memory for tpu_custom_call.1']
    #allocation5 [shape = 'u8[16384]{0}', space=vmem, size = 0x4000, scoped, tag = 'output window, operand 0, single buffered']
    %9 = vsyncpa [#allocation3], 0
    %10 = vsyncpa [#allocation4], 0
    // Predicated region
    $region2: #{tpu_custom_call.1} parent=1 // pred_check
      _
    $region3: #{tpu_custom_call.1} parent=1 // pred_check_branch
      %12 = sbr.rel (0) target = $region5
    $region4: #{tpu_custom_call.1} parent=1 // pred_region
      _
    $region5: #{tpu_custom_call.1} parent=1 // pred_fallthru
      _
    // Predicated region
    $region6: #{tpu_custom_call.1} parent=1 // pred_check
      _
    $region7: #{tpu_custom_call.1} parent=1 // pred_check_branch
      %14 = sbr.rel (0) target = $region9
    $region8: #{tpu_custom_call.1} parent=1 // pred_region
      _
    $region9: #{tpu_custom_call.1} parent=1 // pred_fallthru
      _
    // Predicated region
    $region10: #{tpu_custom_call.1} parent=1 // pred_check
      _
    $region11: #{tpu_custom_call.1} parent=1 // pred_check_branch
      %16 = sbr.rel (0) target = $region13
    $region12: #{tpu_custom_call.1} parent=1 // pred_region
      _
    $region13: #{tpu_custom_call.1} parent=1 // pred_fallthru
      _
    // Predicated region
    $region14: #{tpu_custom_call.1} parent=1 // pred_check
      _
    $region15: #{tpu_custom_call.1} parent=1 // pred_check_branch
      %18 = sbr.rel (0) target = $region17
    $region16: #{tpu_custom_call.1} parent=1 // pred_region
      %s20 = ssub.s32 256, 256
      %21 = vsyncadd [#allocation3], %s20
      %s22 = sshll.u32 [#allocation2], 4
      %s23 = int_to_ptr.vmem [resolvable:$true] %s22
      %28 = dma.hbm_to_vmem [thread:$0]  %s3, 256, %s23, [#allocation3], 128, 128, 8
    $region17: #{tpu_custom_call.1} parent=1 // pred_fallthru
      _
    // Predicated region
    $region18: #{tpu_custom_call.1} parent=1 // pred_check
      _
    $region19: #{tpu_custom_call.1} parent=1 // pred_check_branch
      %30 = sbr.rel (0) target = $region21
    $region20: #{tpu_custom_call.1} parent=1 // pred_region
      %31 = dma.done [#allocation3], 256
    $region21: #{tpu_custom_call.1} parent=1 // pred_fallthru
      _
    %v32 = vld [vmem:[%s0] sm:$0xff]
    %v33 = vld [vmem:[%s0 + $0x8] sm:$0xff]
    %v34 = vld [vmem:[%s0 + $0x10] sm:$0xff]
    %v35 = vld [vmem:[%s0 + $0x18] sm:$0xff]
    %v36 = vld [vmem:[%s2] sm:$0xff]
    %v37 = vld [vmem:[%s2 + $0x8] sm:$0xff]
    %v38 = vld [vmem:[#allocation2] sm:$0xff]
    %v39 = vld [vmem:[#allocation2 + $0x8] sm:$0x3]
    %vm40 = vcmask 130048
    %v42 = vsel %vm40, %v32, 0
    %v45 = vsel %vm40, %v33, 0
    %v48 = vsel %vm40, %v34, 0
    %v51 = vsel %vm40, %v35, 0
    %53 = vmatprep.subr.mxu0 0.0
    %54 = vmatpush1.msra.mxu0 %v36
    %55 = vmatprep.subr.mxu0 0.0
    %56 = vmatpush1.msra.mxu0 %v37
    %57 = vmatprep.subr.mxu0 0.0
    %58 = vmatpush1.msra.mxu0 0.0
    %59 = vmatprep.subr.mxu0 0.0
    %60 = vmatpush1.msra.mxu0 0.0
    %61 = vmatprep.subr.mxu0 0.0
    %62 = vmatpush1.msra.mxu0 0.0
    %63 = vmatprep.subr.mxu0 0.0
    %64 = vmatpush1.msra.mxu0 0.0
    %65 = vmatprep.subr.mxu0 0.0
    %66 = vmatpush1.msra.mxu0 0.0
    %67 = vmatprep.subr.mxu0 0.0
    %68 = vmatpush1.msra.mxu0 0.0
    %69 = vmatprep.subr.mxu0 0.0
    %70 = vmatpush1.msra.mxu0 0.0
    %71 = vmatprep.subr.mxu0 0.0
    %72 = vmatpush1.msra.mxu0 0.0
    %73 = vmatprep.subr.mxu0 0.0
    %74 = vmatpush1.msra.mxu0 0.0
    %75 = vmatprep.subr.mxu0 0.0
    %76 = vmatpush1.msra.mxu0 0.0
    %77 = vmatprep.subr.mxu0 0.0
    %78 = vmatpush1.msra.mxu0 0.0
    %79 = vmatprep.subr.mxu0 0.0
    %80 = vmatpush1.msra.mxu0 0.0
    %81 = vmatprep.subr.mxu0 0.0
    %82 = vmatpush1.msra.mxu0 0.0
    %83 = vmatprep.subr.mxu0 0.0
    %84 = vmatpush1.msra.mxu0 0.0
    %85 = vmatprep.subr.mxu0 0.0
    %86 = vmatpush1.msra.mxu0 0.0
    %87 = vmatprep.subr.mxu0 0.0
    %88 = vmatpush1.msra.mxu0 0.0
    %89 = vmatprep.subr.mxu0 0.0
    %90 = vmatpush1.msra.mxu0 0.0
    %91 = vmatprep.subr.mxu0 0.0
    %92 = vmatpush1.msra.mxu0 0.0
    %93 = vmatprep.subr.mxu0 0.0
    %94 = vmatpush1.msra.mxu0 0.0
    %95 = vmatprep.subr.mxu0 0.0
    %96 = vmatpush1.msra.mxu0 0.0
    %97 = vmatprep.subr.mxu0 0.0
    %98 = vmatpush1.msra.mxu0 0.0
    %99 = vmatprep.subr.mxu0 0.0
    %100 = vmatpush1.msra.mxu0 0.0
    %101 = vmatprep.subr.mxu0 0.0
    %102 = vmatpush1.msra.mxu0 0.0
    %103 = vmatprep.subr.mxu0 0.0
    %104 = vmatpush1.msra.mxu0 0.0
    %105 = vmatprep.subr.mxu0 0.0
    %106 = vmatpush1.msra.mxu0 0.0
    %107 = vmatprep.subr.mxu0 0.0
    %108 = vmatpush1.msra.mxu0 0.0
    %109 = vmatprep.subr.mxu0 0.0
    %110 = vmatpush1.msra.mxu0 0.0
    %111 = vmatprep.subr.mxu0 0.0
    %112 = vmatpush1.msra.mxu0 0.0
    %113 = vmatprep.subr.mxu0 0.0
    %114 = vmatpush1.msra.mxu0 0.0
    %115 = vmatprep.subr.mxu0 0.0
    %116 = vmatpush1.msra.mxu0 0.0
    %117 = vmatprep.mubr.f32.mxu0 0.0
    %118 = vmatmul.mubr.f32.gmra.mrb[0].mxu0 %v42
    %v119 = vpop.f32.mrb[0].mxu0
    %v120 = vadd.f32 0.0, %v119
    %v121 = vpop.f32.mrb[0].mxu0
    %122 = vmatprep.mubr.f32.mxu0 0.0
    %123 = vmatmul.mubr.f32.gmra.mrb[0].mxu0 %v45
    %v124 = vpop.f32.mrb[0].mxu0
    %v125 = vadd.f32 0.0, %v124
    %v126 = vpop.f32.mrb[0].mxu0
    %127 = vmatprep.mubr.f32.mxu0 0.0
    %128 = vmatmul.mubr.f32.gmra.mrb[0].mxu0 %v48
    %v129 = vpop.f32.mrb[0].mxu0
    %v130 = vadd.f32 0.0, %v129
    %v131 = vpop.f32.mrb[0].mxu0
    %132 = vmatprep.mubr.f32.mxu0 0.0
    %133 = vmatmul.mubr.f32.gmra.mrb[0].mxu0 %v51
    %v134 = vpop.f32.mrb[0].mxu0
    %v135 = vadd.f32 0.0, %v134
    %v136 = vpop.f32.mrb[0].mxu0
    %137 = vdwg.mxu0
    %v138 = vlaneseq
    %v139 = vshrl.u32 %v138, 7
    %v140 = vsub.s32 0, %v139
    %v141 = vrot.slane %v38, %v140
    %v142 = vadd.f32 %v120, %v141
    %v143 = vadd.f32 %v125, %v141
    %v144 = vadd.f32 %v130, %v141
    %v145 = vadd.f32 %v135, %v141
    %v150 = vcombine.high %v142, %v142
    %v152 = vunpack.c.l.s4 1966171168
    %v153 = vunpack.c.0.s8 %v152
    %v154 = vlaneseq
    %v155 = vshrl.u32 %v154, 7
    %v156 = vsub.s32 %v153, %v155
    %v157 = vrot.slane %v142, %v156
    %v159 = vunpack.c.l.s4 1966171168
    %v160 = vunpack.c.0.s8 %v159
    %v161 = vlaneseq
    %v162 = vshrl.u32 %v161, 7
    %v163 = vsub.s32 %v160, %v162
    %v164 = vrot.slane %v150, %v163
    %v165 = vcombine.high %v157, %v157
    %v166 = vcombine.high %v164, %v164
    %v168 = vunpack.c.l.s4 1966171168
    %v169 = vunpack.c.0.s8 %v168
    %v170 = vlaneseq
    %v171 = vshrl.u32 %v170, 7
    %v172 = vsub.s32 %v169, %v171
    %v173 = vrot.slane %v157, %v172
    %v175 = vunpack.c.l.s4 1966171168
    %v176 = vunpack.c.0.s8 %v175
    %v177 = vlaneseq
    %v178 = vshrl.u32 %v177, 7
    %v179 = vsub.s32 %v176, %v178
    %v180 = vrot.slane %v164, %v179
    %v182 = vunpack.c.l.s4 1966171168
    %v183 = vunpack.c.0.s8 %v182
    %v184 = vlaneseq
    %v185 = vshrl.u32 %v184, 7
    %v186 = vsub.s32 %v183, %v185
    %v187 = vrot.slane %v165, %v186
    %v189 = vunpack.c.l.s4 1966171168
    %v190 = vunpack.c.0.s8 %v189
    %v191 = vlaneseq
    %v192 = vshrl.u32 %v191, 7
    %v193 = vsub.s32 %v190, %v192
    %v194 = vrot.slane %v166, %v193
    %v195 = vcombine.high %v173, %v173
    %v196 = vcombine.high %v180, %v180
    %v197 = vcombine.high %v187, %v187
    %v198 = vcombine.high %v194, %v194
    %v199 = vcombine.high %v143, %v143
    %v201 = vunpack.c.l.s4 1966171168
    %v202 = vunpack.c.0.s8 %v201
    %v203 = vlaneseq
    %v204 = vshrl.u32 %v203, 7
    %v205 = vsub.s32 %v202, %v204
    %v206 = vrot.slane %v143, %v205
    %v208 = vunpack.c.l.s4 1966171168
    %v209 = vunpack.c.0.s8 %v208
    %v210 = vlaneseq
    %v211 = vshrl.u32 %v210, 7
    %v212 = vsub.s32 %v209, %v211
    %v213 = vrot.slane %v199, %v212
    %v214 = vcombine.high %v206, %v206
    %v215 = vcombine.high %v213, %v213
    %v217 = vunpack.c.l.s4 1966171168
    %v218 = vunpack.c.0.s8 %v217
    %v219 = vlaneseq
    %v220 = vshrl.u32 %v219, 7
    %v221 = vsub.s32 %v218, %v220
    %v222 = vrot.slane %v206, %v221
    %v224 = vunpack.c.l.s4 1966171168
    %v225 = vunpack.c.0.s8 %v224
    %v226 = vlaneseq
    %v227 = vshrl.u32 %v226, 7
    %v228 = vsub.s32 %v225, %v227
    %v229 = vrot.slane %v213, %v228
    %v231 = vunpack.c.l.s4 1966171168
    %v232 = vunpack.c.0.s8 %v231
    %v233 = vlaneseq
    %v234 = vshrl.u32 %v233, 7
    %v235 = vsub.s32 %v232, %v234
    %v236 = vrot.slane %v214, %v235
    %v238 = vunpack.c.l.s4 1966171168
    %v239 = vunpack.c.0.s8 %v238
    %v240 = vlaneseq
    %v241 = vshrl.u32 %v240, 7
    %v242 = vsub.s32 %v239, %v241
    %v243 = vrot.slane %v215, %v242
    %v244 = vcombine.high %v222, %v222
    %v245 = vcombine.high %v229, %v229
    %v246 = vcombine.high %v236, %v236
    %v247 = vcombine.high %v243, %v243
    %v248 = vcombine.high %v144, %v144
    %v250 = vunpack.c.l.s4 1966171168
    %v251 = vunpack.c.0.s8 %v250
    %v252 = vlaneseq
    %v253 = vshrl.u32 %v252, 7
    %v254 = vsub.s32 %v251, %v253
    %v255 = vrot.slane %v144, %v254
    %v257 = vunpack.c.l.s4 1966171168
    %v258 = vunpack.c.0.s8 %v257
    %v259 = vlaneseq
    %v260 = vshrl.u32 %v259, 7
    %v261 = vsub.s32 %v258, %v260
    %v262 = vrot.slane %v248, %v261
    %v263 = vcombine.high %v255, %v255
    %v264 = vcombine.high %v262, %v262
    %v266 = vunpack.c.l.s4 1966171168
    %v267 = vunpack.c.0.s8 %v266
    %v268 = vlaneseq
    %v269 = vshrl.u32 %v268, 7
    %v270 = vsub.s32 %v267, %v269
    %v271 = vrot.slane %v255, %v270
    %v273 = vunpack.c.l.s4 1966171168
    %v274 = vunpack.c.0.s8 %v273
    %v275 = vlaneseq
    %v276 = vshrl.u32 %v275, 7
    %v277 = vsub.s32 %v274, %v276
    %v278 = vrot.slane %v262, %v277
    %v280 = vunpack.c.l.s4 1966171168
    %v281 = vunpack.c.0.s8 %v280
    %v282 = vlaneseq
    %v283 = vshrl.u32 %v282, 7
    %v284 = vsub.s32 %v281, %v283
    %v285 = vrot.slane %v263, %v284
    %v287 = vunpack.c.l.s4 1966171168
    %v288 = vunpack.c.0.s8 %v287
    %v289 = vlaneseq
    %v290 = vshrl.u32 %v289, 7
    %v291 = vsub.s32 %v288, %v290
    %v292 = vrot.slane %v264, %v291
    %v293 = vcombine.high %v271, %v271
    %v294 = vcombine.high %v278, %v278
    %v295 = vcombine.high %v285, %v285
    %v296 = vcombine.high %v292, %v292
    %v297 = vcombine.high %v145, %v145
    %v299 = vunpack.c.l.s4 1966171168
    %v300 = vunpack.c.0.s8 %v299
    %v301 = vlaneseq
    %v302 = vshrl.u32 %v301, 7
    %v303 = vsub.s32 %v300, %v302
    %v304 = vrot.slane %v145, %v303
    %v306 = vunpack.c.l.s4 1966171168
    %v307 = vunpack.c.0.s8 %v306
    %v308 = vlaneseq
    %v309 = vshrl.u32 %v308, 7
    %v310 = vsub.s32 %v307, %v309
    %v311 = vrot.slane %v297, %v310
    %v312 = vcombine.high %v304, %v304
    %v313 = vcombine.high %v311, %v311
    %v315 = vunpack.c.l.s4 1966171168
    %v316 = vunpack.c.0.s8 %v315
    %v317 = vlaneseq
    %v318 = vshrl.u32 %v317, 7
    %v319 = vsub.s32 %v316, %v318
    %v320 = vrot.slane %v304, %v319
    %v322 = vunpack.c.l.s4 1966171168
    %v323 = vunpack.c.0.s8 %v322
    %v324 = vlaneseq
    %v325 = vshrl.u32 %v324, 7
    %v326 = vsub.s32 %v323, %v325
    %v327 = vrot.slane %v311, %v326
    %v329 = vunpack.c.l.s4 1966171168
    %v330 = vunpack.c.0.s8 %v329
    %v331 = vlaneseq
    %v332 = vshrl.u32 %v331, 7
    %v333 = vsub.s32 %v330, %v332
    %v334 = vrot.slane %v312, %v333
    %v336 = vunpack.c.l.s4 1966171168
    %v337 = vunpack.c.0.s8 %v336
    %v338 = vlaneseq
    %v339 = vshrl.u32 %v338, 7
    %v340 = vsub.s32 %v337, %v339
    %v341 = vrot.slane %v313, %v340
    %v342 = vcombine.high %v320, %v320
    %v343 = vcombine.high %v327, %v327
    %v344 = vcombine.high %v334, %v334
    %v345 = vcombine.high %v341, %v341
    %v346 = vlaneseq
    %v347 = vshrl.u32 %v346, 7
    %v348 = vsub.s32 0, %v347
    %v349 = vrot.slane %v173, %v348
    %v350 = vlaneseq
    %v351 = vshrl.u32 %v350, 7
    %v352 = vsub.s32 0, %v351
    %v353 = vrot.slane %v187, %v352
    %v354 = vlaneseq
    %v355 = vshrl.u32 %v354, 7
    %v356 = vsub.s32 0, %v355
    %v357 = vrot.slane %v195, %v356
    %v358 = vlaneseq
    %v359 = vshrl.u32 %v358, 7
    %v360 = vsub.s32 0, %v359
    %v361 = vrot.slane %v197, %v360
    %v362 = vlaneseq
    %v363 = vshrl.u32 %v362, 7
    %v364 = vsub.s32 0, %v363
    %v365 = vrot.slane %v180, %v364
    %v366 = vlaneseq
    %v367 = vshrl.u32 %v366, 7
    %v368 = vsub.s32 0, %v367
    %v369 = vrot.slane %v194, %v368
    %v370 = vlaneseq
    %v371 = vshrl.u32 %v370, 7
    %v372 = vsub.s32 0, %v371
    %v373 = vrot.slane %v196, %v372
    %v374 = vlaneseq
    %v375 = vshrl.u32 %v374, 7
    %v376 = vsub.s32 0, %v375
    %v377 = vrot.slane %v198, %v376
    %v378 = vlaneseq
    %v379 = vshrl.u32 %v378, 7
    %v380 = vsub.s32 0, %v379
    %v381 = vrot.slane %v222, %v380
    %v382 = vlaneseq
    %v383 = vshrl.u32 %v382, 7
    %v384 = vsub.s32 0, %v383
    %v385 = vrot.slane %v236, %v384
    %v386 = vlaneseq
    %v387 = vshrl.u32 %v386, 7
    %v388 = vsub.s32 0, %v387
    %v389 = vrot.slane %v244, %v388
    %v390 = vlaneseq
    %v391 = vshrl.u32 %v390, 7
    %v392 = vsub.s32 0, %v391
    %v393 = vrot.slane %v246, %v392
    %v394 = vlaneseq
    %v395 = vshrl.u32 %v394, 7
    %v396 = vsub.s32 0, %v395
    %v397 = vrot.slane %v229, %v396
    %v398 = vlaneseq
    %v399 = vshrl.u32 %v398, 7
    %v400 = vsub.s32 0, %v399
    %v401 = vrot.slane %v243, %v400
    %v402 = vlaneseq
    %v403 = vshrl.u32 %v402, 7
    %v404 = vsub.s32 0, %v403
    %v405 = vrot.slane %v245, %v404
    %v406 = vlaneseq
    %v407 = vshrl.u32 %v406, 7
    %v408 = vsub.s32 0, %v407
    %v409 = vrot.slane %v247, %v408
    %v410 = vlaneseq
    %v411 = vshrl.u32 %v410, 7
    %v412 = vsub.s32 0, %v411
    %v413 = vrot.slane %v271, %v412
    %v414 = vlaneseq
    %v415 = vshrl.u32 %v414, 7
    %v416 = vsub.s32 0, %v415
    %v417 = vrot.slane %v285, %v416
    %v418 = vlaneseq
    %v419 = vshrl.u32 %v418, 7
    %v420 = vsub.s32 0, %v419
    %v421 = vrot.slane %v293, %v420
    %v422 = vlaneseq
    %v423 = vshrl.u32 %v422, 7
    %v424 = vsub.s32 0, %v423
    %v425 = vrot.slane %v295, %v424
    %v426 = vlaneseq
    %v427 = vshrl.u32 %v426, 7
    %v428 = vsub.s32 0, %v427
    %v429 = vrot.slane %v278, %v428
    %v430 = vlaneseq
    %v431 = vshrl.u32 %v430, 7
    %v432 = vsub.s32 0, %v431
    %v433 = vrot.slane %v292, %v432
    %v434 = vlaneseq
    %v435 = vshrl.u32 %v434, 7
    %v436 = vsub.s32 0, %v435
    %v437 = vrot.slane %v294, %v436
    %v438 = vlaneseq
    %v439 = vshrl.u32 %v438, 7
    %v440 = vsub.s32 0, %v439
    %v441 = vrot.slane %v296, %v440
    %v442 = vlaneseq
    %v443 = vshrl.u32 %v442, 7
    %v444 = vsub.s32 0, %v443
    %v445 = vrot.slane %v320, %v444
    %v446 = vlaneseq
    %v447 = vshrl.u32 %v446, 7
    %v448 = vsub.s32 0, %v447
    %v449 = vrot.slane %v334, %v448
    %v450 = vlaneseq
    %v451 = vshrl.u32 %v450, 7
    %v452 = vsub.s32 0, %v451
    %v453 = vrot.slane %v342, %v452
    %v454 = vlaneseq
    %v455 = vshrl.u32 %v454, 7
    %v456 = vsub.s32 0, %v455
    %v457 = vrot.slane %v344, %v456
    %v458 = vlaneseq
    %v459 = vshrl.u32 %v458, 7
    %v460 = vsub.s32 0, %v459
    %v461 = vrot.slane %v327, %v460
    %v462 = vlaneseq
    %v463 = vshrl.u32 %v462, 7
    %v464 = vsub.s32 0, %v463
    %v465 = vrot.slane %v341, %v464
    %v466 = vlaneseq
    %v467 = vshrl.u32 %v466, 7
    %v468 = vsub.s32 0, %v467
    %v469 = vrot.slane %v343, %v468
    %v470 = vlaneseq
    %v471 = vshrl.u32 %v470, 7
    %v472 = vsub.s32 0, %v471
    %v473 = vrot.slane %v345, %v472
    %510 = vrot.lane.b32.xlu0 %v120, 96
    %v511 = vpop.permute.xlu0 %510
    %512 = vrot.lane.b32.xlu0 %v125, 96
    %v513 = vpop.permute.xlu0 %512
    %514 = vrot.lane.b32.xlu0 %v130, 96
    %v515 = vpop.permute.xlu0 %514
    %516 = vrot.lane.b32.xlu0 %v135, 96
    %v517 = vpop.permute.xlu0 %516
    %v522 = vadd.f32 %v349, %v511
    %v523 = vadd.f32 %v353, %v511
    %v524 = vadd.f32 %v357, %v511
    %v525 = vadd.f32 %v361, %v511
    %v526 = vadd.f32 %v365, %v511
    %v527 = vadd.f32 %v369, %v511
    %v528 = vadd.f32 %v373, %v511
    %v529 = vadd.f32 %v377, %v511
    %v530 = vadd.f32 %v381, %v513
    %v531 = vadd.f32 %v385, %v513
    %v532 = vadd.f32 %v389, %v513
    %v533 = vadd.f32 %v393, %v513
    %v534 = vadd.f32 %v397, %v513
    %v535 = vadd.f32 %v401, %v513
    %v536 = vadd.f32 %v405, %v513
    %v537 = vadd.f32 %v409, %v513
    %v538 = vadd.f32 %v413, %v515
    %v539 = vadd.f32 %v417, %v515
    %v540 = vadd.f32 %v421, %v515
    %v541 = vadd.f32 %v425, %v515
    %v542 = vadd.f32 %v429, %v515
    %v543 = vadd.f32 %v433, %v515
    %v544 = vadd.f32 %v437, %v515
    %v545 = vadd.f32 %v441, %v515
    %v546 = vadd.f32 %v445, %v517
    %v547 = vadd.f32 %v449, %v517
    %v548 = vadd.f32 %v453, %v517
    %v549 = vadd.f32 %v457, %v517
    %v550 = vadd.f32 %v461, %v517
    %v551 = vadd.f32 %v465, %v517
    %v552 = vadd.f32 %v469, %v517
    %v553 = vadd.f32 %v473, %v517
    %554 = vset.pattern.permute.xlu0 64
    %555 = vperm.xlu0 %554, %v120
    %v556 = vpop.permute.xlu0 %555
    %558 = vset.pattern.permute.xlu0 64
    %559 = vperm.xlu0 %558, %v125
    %v560 = vpop.permute.xlu0 %559
    %562 = vset.pattern.permute.xlu0 64
    %563 = vperm.xlu0 %562, %v130
    %v564 = vpop.permute.xlu0 %563
    %566 = vset.pattern.permute.xlu0 64
    %567 = vperm.xlu0 %566, %v135
    %v568 = vpop.permute.xlu0 %567
    %570 = vset.pattern.permute.xlu0 65
    %571 = vperm.xlu0 %570, %v120
    %v572 = vpop.permute.xlu0 %571
    %573 = vset.pattern.permute.xlu0 65
    %574 = vperm.xlu0 %573, %v125
    %v575 = vpop.permute.xlu0 %574
    %576 = vset.pattern.permute.xlu0 65
    %577 = vperm.xlu0 %576, %v130
    %v578 = vpop.permute.xlu0 %577
    %579 = vset.pattern.permute.xlu0 65
    %580 = vperm.xlu0 %579, %v135
    %v581 = vpop.permute.xlu0 %580
    %v582 = vlaneseq
    %v583 = vand.u32 %v582, 127
    %v584 = vlaneseq
    %v585 = vshrl.u32 %v584, 7
    %v586 = vsub.s32 %v583, %v585
    %v587 = vrot.slane %v572, %v586
    %v588 = vlaneseq
    %v589 = vshrl.u32 %v588, 7
    %v590 = vsub.s32 %v583, %v589
    %v591 = vrot.slane %v575, %v590
    %v592 = vlaneseq
    %v593 = vshrl.u32 %v592, 7
    %v594 = vsub.s32 %v583, %v593
    %v595 = vrot.slane %v578, %v594
    %v596 = vlaneseq
    %v597 = vshrl.u32 %v596, 7
    %v598 = vsub.s32 %v583, %v597
    %v599 = vrot.slane %v581, %v598
    %vm600 = vcmask 1041409
    %vm601 = vcmask 1042434
    %v602 = vsel %vm601, %v587, %v587
    %vm603 = vcmask 1043459
    %v604 = vsel %vm603, %v587, %v602
    %vm605 = vcmask 1044484
    %v606 = vsel %vm605, %v587, %v604
    %vm607 = vcmask 1045509
    %v608 = vsel %vm607, %v587, %v606
    %vm609 = vcmask 1046534
    %v610 = vsel %vm609, %v587, %v608
    %vm611 = vcmask 1047559
    %v612 = vsel %vm611, %v587, %v610
    %v613 = vsel %vm601, %v591, %v591
    %v614 = vsel %vm603, %v591, %v613
    %v615 = vsel %vm605, %v591, %v614
    %v616 = vsel %vm607, %v591, %v615
    %v617 = vsel %vm609, %v591, %v616
    %v618 = vsel %vm611, %v591, %v617
    %v619 = vsel %vm601, %v595, %v595
    %v620 = vsel %vm603, %v595, %v619
    %v621 = vsel %vm605, %v595, %v620
    %v622 = vsel %vm607, %v595, %v621
    %v623 = vsel %vm609, %v595, %v622
    %v624 = vsel %vm611, %v595, %v623
    %v625 = vsel %vm601, %v599, %v599
    %v626 = vsel %vm603, %v599, %v625
    %v627 = vsel %vm605, %v599, %v626
    %v628 = vsel %vm607, %v599, %v627
    %v629 = vsel %vm609, %v599, %v628
    %v630 = vsel %vm611, %v599, %v629
    %v635 = vadd.f32 %v556, %v612
    %v636 = vadd.f32 %v560, %v618
    %v637 = vadd.f32 %v564, %v624
    %v638 = vadd.f32 %v568, %v630
    %v639 = vmax.f32 %v522, 0.0
    %v640 = vmax.f32 %v523, 0.0
    %v641 = vmax.f32 %v524, 0.0
    %v642 = vmax.f32 %v525, 0.0
    %v643 = vmax.f32 %v526, 0.0
    %v644 = vmax.f32 %v527, 0.0
    %v645 = vmax.f32 %v528, 0.0
    %v646 = vmax.f32 %v529, 0.0
    %v647 = vmax.f32 %v530, 0.0
    %v648 = vmax.f32 %v531, 0.0
    %v649 = vmax.f32 %v532, 0.0
    %v650 = vmax.f32 %v533, 0.0
    %v651 = vmax.f32 %v534, 0.0
    %v652 = vmax.f32 %v535, 0.0
    %v653 = vmax.f32 %v536, 0.0
    %v654 = vmax.f32 %v537, 0.0
    %v655 = vmax.f32 %v538, 0.0
    %v656 = vmax.f32 %v539, 0.0
    %v657 = vmax.f32 %v540, 0.0
    %v658 = vmax.f32 %v541, 0.0
    %v659 = vmax.f32 %v542, 0.0
    %v660 = vmax.f32 %v543, 0.0
    %v661 = vmax.f32 %v544, 0.0
    %v662 = vmax.f32 %v545, 0.0
    %v663 = vmax.f32 %v546, 0.0
    %v664 = vmax.f32 %v547, 0.0
    %v665 = vmax.f32 %v548, 0.0
    %v666 = vmax.f32 %v549, 0.0
    %v667 = vmax.f32 %v550, 0.0
    %v668 = vmax.f32 %v551, 0.0
    %v669 = vmax.f32 %v552, 0.0
    %v670 = vmax.f32 %v553, 0.0
    %v671 = vlaneseq
    %v672 = vshrl.u32 %v671, 7
    %v673 = vsub.s32 1, %v672
    %v674 = vrot.slane %v38, %v673
    %v675 = vmul.f32 %v639, %v674
    %v676 = vmul.f32 %v640, %v674
    %v677 = vmul.f32 %v641, %v674
    %v678 = vmul.f32 %v642, %v674
    %v679 = vmul.f32 %v643, %v674
    %v680 = vmul.f32 %v644, %v674
    %v681 = vmul.f32 %v645, %v674
    %v682 = vmul.f32 %v646, %v674
    %v683 = vmul.f32 %v647, %v674
    %v684 = vmul.f32 %v648, %v674
    %v685 = vmul.f32 %v649, %v674
    %v686 = vmul.f32 %v650, %v674
    %v687 = vmul.f32 %v651, %v674
    %v688 = vmul.f32 %v652, %v674
    %v689 = vmul.f32 %v653, %v674
    %v690 = vmul.f32 %v654, %v674
    %v691 = vmul.f32 %v655, %v674
    %v692 = vmul.f32 %v656, %v674
    %v693 = vmul.f32 %v657, %v674
    %v694 = vmul.f32 %v658, %v674
    %v695 = vmul.f32 %v659, %v674
    %v696 = vmul.f32 %v660, %v674
    %v697 = vmul.f32 %v661, %v674
    %v698 = vmul.f32 %v662, %v674
    %v699 = vmul.f32 %v663, %v674
    %v700 = vmul.f32 %v664, %v674
    %v701 = vmul.f32 %v665, %v674
    %v702 = vmul.f32 %v666, %v674
    %v703 = vmul.f32 %v667, %v674
    %v704 = vmul.f32 %v668, %v674
    %v705 = vmul.f32 %v669, %v674
    %v706 = vmul.f32 %v670, %v674
    %vm707 = vcmask 261120
    %v708 = vsel %vm707, %v675, 0.0
    %709 = vadd.xlane.f32.xlu0 %v708
    %v710 = vpop.xlane.xlu0 %709
    %v711 = vsel %vm707, %v676, 0.0
    %712 = vadd.xlane.f32.xlu0 %v711
    %v713 = vpop.xlane.xlu0 %712
    %v714 = vsel %vm707, %v677, 0.0
    %715 = vadd.xlane.f32.xlu0 %v714
    %v716 = vpop.xlane.xlu0 %715
    %v717 = vsel %vm707, %v678, 0.0
    %718 = vadd.xlane.f32.xlu0 %v717
    %v719 = vpop.xlane.xlu0 %718
    %v720 = vsel %vm707, %v679, 0.0
    %721 = vadd.xlane.f32.xlu0 %v720
    %v722 = vpop.xlane.xlu0 %721
    %v723 = vsel %vm707, %v680, 0.0
    %724 = vadd.xlane.f32.xlu0 %v723
    %v725 = vpop.xlane.xlu0 %724
    %v726 = vsel %vm707, %v681, 0.0
    %727 = vadd.xlane.f32.xlu0 %v726
    %v728 = vpop.xlane.xlu0 %727
    %v729 = vsel %vm707, %v682, 0.0
    %730 = vadd.xlane.f32.xlu0 %v729
    %v731 = vpop.xlane.xlu0 %730
    %v732 = vsel %vm707, %v683, 0.0
    %733 = vadd.xlane.f32.xlu0 %v732
    %v734 = vpop.xlane.xlu0 %733
    %v735 = vsel %vm707, %v684, 0.0
    %736 = vadd.xlane.f32.xlu0 %v735
    %v737 = vpop.xlane.xlu0 %736
    %v738 = vsel %vm707, %v685, 0.0
    %739 = vadd.xlane.f32.xlu0 %v738
    %v740 = vpop.xlane.xlu0 %739
    %v741 = vsel %vm707, %v686, 0.0
    %742 = vadd.xlane.f32.xlu0 %v741
    %v743 = vpop.xlane.xlu0 %742
    %v744 = vsel %vm707, %v687, 0.0
    %745 = vadd.xlane.f32.xlu0 %v744
    %v746 = vpop.xlane.xlu0 %745
    %v747 = vsel %vm707, %v688, 0.0
    %748 = vadd.xlane.f32.xlu0 %v747
    %v749 = vpop.xlane.xlu0 %748
    %v750 = vsel %vm707, %v689, 0.0
    %751 = vadd.xlane.f32.xlu0 %v750
    %v752 = vpop.xlane.xlu0 %751
    %v753 = vsel %vm707, %v690, 0.0
    %754 = vadd.xlane.f32.xlu0 %v753
    %v755 = vpop.xlane.xlu0 %754
    %v756 = vsel %vm707, %v691, 0.0
    %757 = vadd.xlane.f32.xlu0 %v756
    %v758 = vpop.xlane.xlu0 %757
    %v759 = vsel %vm707, %v692, 0.0
    %760 = vadd.xlane.f32.xlu0 %v759
    %v761 = vpop.xlane.xlu0 %760
    %v762 = vsel %vm707, %v693, 0.0
    %763 = vadd.xlane.f32.xlu0 %v762
    %v764 = vpop.xlane.xlu0 %763
    %v765 = vsel %vm707, %v694, 0.0
    %766 = vadd.xlane.f32.xlu0 %v765
    %v767 = vpop.xlane.xlu0 %766
    %v768 = vsel %vm707, %v695, 0.0
    %769 = vadd.xlane.f32.xlu0 %v768
    %v770 = vpop.xlane.xlu0 %769
    %v771 = vsel %vm707, %v696, 0.0
    %772 = vadd.xlane.f32.xlu0 %v771
    %v773 = vpop.xlane.xlu0 %772
    %v774 = vsel %vm707, %v697, 0.0
    %775 = vadd.xlane.f32.xlu0 %v774
    %v776 = vpop.xlane.xlu0 %775
    %v777 = vsel %vm707, %v698, 0.0
    %778 = vadd.xlane.f32.xlu0 %v777
    %v779 = vpop.xlane.xlu0 %778
    %v780 = vsel %vm707, %v699, 0.0
    %781 = vadd.xlane.f32.xlu0 %v780
    %v782 = vpop.xlane.xlu0 %781
    %v783 = vsel %vm707, %v700, 0.0
    %784 = vadd.xlane.f32.xlu0 %v783
    %v785 = vpop.xlane.xlu0 %784
    %v786 = vsel %vm707, %v701, 0.0
    %787 = vadd.xlane.f32.xlu0 %v786
    %v788 = vpop.xlane.xlu0 %787
    %v789 = vsel %vm707, %v702, 0.0
    %790 = vadd.xlane.f32.xlu0 %v789
    %v791 = vpop.xlane.xlu0 %790
    %v792 = vsel %vm707, %v703, 0.0
    %793 = vadd.xlane.f32.xlu0 %v792
    %v794 = vpop.xlane.xlu0 %793
    %v795 = vsel %vm707, %v704, 0.0
    %796 = vadd.xlane.f32.xlu0 %v795
    %v797 = vpop.xlane.xlu0 %796
    %v798 = vsel %vm707, %v705, 0.0
    %799 = vadd.xlane.f32.xlu0 %v798
    %v800 = vpop.xlane.xlu0 %799
    %v801 = vsel %vm707, %v706, 0.0
    %802 = vadd.xlane.f32.xlu0 %v801
    %v803 = vpop.xlane.xlu0 %802
    %v836 = vlaneseq
    %v837 = vshrl.u32 %v836, 7
    %v838 = vsub.s32 %v583, %v837
    %v839 = vrot.slane %v710, %v838
    %v840 = vlaneseq
    %v841 = vshrl.u32 %v840, 7
    %v842 = vsub.s32 %v583, %v841
    %v843 = vrot.slane %v713, %v842
    %v844 = vlaneseq
    %v845 = vshrl.u32 %v844, 7
    %v846 = vsub.s32 %v583, %v845
    %v847 = vrot.slane %v716, %v846
    %v848 = vlaneseq
    %v849 = vshrl.u32 %v848, 7
    %v850 = vsub.s32 %v583, %v849
    %v851 = vrot.slane %v719, %v850
    %v852 = vlaneseq
    %v853 = vshrl.u32 %v852, 7
    %v854 = vsub.s32 %v583, %v853
    %v855 = vrot.slane %v722, %v854
    %v856 = vlaneseq
    %v857 = vshrl.u32 %v856, 7
    %v858 = vsub.s32 %v583, %v857
    %v859 = vrot.slane %v725, %v858
    %v860 = vlaneseq
    %v861 = vshrl.u32 %v860, 7
    %v862 = vsub.s32 %v583, %v861
    %v863 = vrot.slane %v728, %v862
    %v864 = vlaneseq
    %v865 = vshrl.u32 %v864, 7
    %v866 = vsub.s32 %v583, %v865
    %v867 = vrot.slane %v731, %v866
    %v868 = vlaneseq
    %v869 = vshrl.u32 %v868, 7
    %v870 = vsub.s32 %v583, %v869
    %v871 = vrot.slane %v734, %v870
    %v872 = vlaneseq
    %v873 = vshrl.u32 %v872, 7
    %v874 = vsub.s32 %v583, %v873
    %v875 = vrot.slane %v737, %v874
    %v876 = vlaneseq
    %v877 = vshrl.u32 %v876, 7
    %v878 = vsub.s32 %v583, %v877
    %v879 = vrot.slane %v740, %v878
    %v880 = vlaneseq
    %v881 = vshrl.u32 %v880, 7
    %v882 = vsub.s32 %v583, %v881
    %v883 = vrot.slane %v743, %v882
    %v884 = vlaneseq
    %v885 = vshrl.u32 %v884, 7
    %v886 = vsub.s32 %v583, %v885
    %v887 = vrot.slane %v746, %v886
    %v888 = vlaneseq
    %v889 = vshrl.u32 %v888, 7
    %v890 = vsub.s32 %v583, %v889
    %v891 = vrot.slane %v749, %v890
    %v892 = vlaneseq
    %v893 = vshrl.u32 %v892, 7
    %v894 = vsub.s32 %v583, %v893
    %v895 = vrot.slane %v752, %v894
    %v896 = vlaneseq
    %v897 = vshrl.u32 %v896, 7
    %v898 = vsub.s32 %v583, %v897
    %v899 = vrot.slane %v755, %v898
    %v900 = vlaneseq
    %v901 = vshrl.u32 %v900, 7
    %v902 = vsub.s32 %v583, %v901
    %v903 = vrot.slane %v758, %v902
    %v904 = vlaneseq
    %v905 = vshrl.u32 %v904, 7
    %v906 = vsub.s32 %v583, %v905
    %v907 = vrot.slane %v761, %v906
    %v908 = vlaneseq
    %v909 = vshrl.u32 %v908, 7
    %v910 = vsub.s32 %v583, %v909
    %v911 = vrot.slane %v764, %v910
    %v912 = vlaneseq
    %v913 = vshrl.u32 %v912, 7
    %v914 = vsub.s32 %v583, %v913
    %v915 = vrot.slane %v767, %v914
    %v916 = vlaneseq
    %v917 = vshrl.u32 %v916, 7
    %v918 = vsub.s32 %v583, %v917
    %v919 = vrot.slane %v770, %v918
    %v920 = vlaneseq
    %v921 = vshrl.u32 %v920, 7
    %v922 = vsub.s32 %v583, %v921
    %v923 = vrot.slane %v773, %v922
    %v924 = vlaneseq
    %v925 = vshrl.u32 %v924, 7
    %v926 = vsub.s32 %v583, %v925
    %v927 = vrot.slane %v776, %v926
    %v928 = vlaneseq
    %v929 = vshrl.u32 %v928, 7
    %v930 = vsub.s32 %v583, %v929
    %v931 = vrot.slane %v779, %v930
    %v932 = vlaneseq
    %v933 = vshrl.u32 %v932, 7
    %v934 = vsub.s32 %v583, %v933
    %v935 = vrot.slane %v782, %v934
    %v936 = vlaneseq
    %v937 = vshrl.u32 %v936, 7
    %v938 = vsub.s32 %v583, %v937
    %v939 = vrot.slane %v785, %v938
    %v940 = vlaneseq
    %v941 = vshrl.u32 %v940, 7
    %v942 = vsub.s32 %v583, %v941
    %v943 = vrot.slane %v788, %v942
    %v944 = vlaneseq
    %v945 = vshrl.u32 %v944, 7
    %v946 = vsub.s32 %v583, %v945
    %v947 = vrot.slane %v791, %v946
    %v948 = vlaneseq
    %v949 = vshrl.u32 %v948, 7
    %v950 = vsub.s32 %v583, %v949
    %v951 = vrot.slane %v794, %v950
    %v952 = vlaneseq
    %v953 = vshrl.u32 %v952, 7
    %v954 = vsub.s32 %v583, %v953
    %v955 = vrot.slane %v797, %v954
    %v956 = vlaneseq
    %v957 = vshrl.u32 %v956, 7
    %v958 = vsub.s32 %v583, %v957
    %v959 = vrot.slane %v800, %v958
    %v960 = vlaneseq
    %v961 = vshrl.u32 %v960, 7
    %v962 = vsub.s32 %v583, %v961
    %v963 = vrot.slane %v803, %v962
    %v964 = vsel %vm600, %v843, %v839
    %v965 = vsel %vm601, %v847, %v964
    %v966 = vsel %vm603, %v851, %v965
    %v967 = vsel %vm605, %v855, %v966
    %v968 = vsel %vm607, %v859, %v967
    %v969 = vsel %vm609, %v863, %v968
    %v970 = vsel %vm611, %v867, %v969
    %v971 = vsel %vm600, %v875, %v871
    %v972 = vsel %vm601, %v879, %v971
    %v973 = vsel %vm603, %v883, %v972
    %v974 = vsel %vm605, %v887, %v973
    %v975 = vsel %vm607, %v891, %v974
    %v976 = vsel %vm609, %v895, %v975
    %v977 = vsel %vm611, %v899, %v976
    %v978 = vsel %vm600, %v907, %v903
    %v979 = vsel %vm601, %v911, %v978
    %v980 = vsel %vm603, %v915, %v979
    %v981 = vsel %vm605, %v919, %v980
    %v982 = vsel %vm607, %v923, %v981
    %v983 = vsel %vm609, %v927, %v982
    %v984 = vsel %vm611, %v931, %v983
    %v985 = vsel %vm600, %v939, %v935
    %v986 = vsel %vm601, %v943, %v985
    %v987 = vsel %vm603, %v947, %v986
    %v988 = vsel %vm605, %v951, %v987
    %v989 = vsel %vm607, %v955, %v988
    %v990 = vsel %vm609, %v959, %v989
    %v991 = vsel %vm611, %v963, %v990
    %v996 = vadd.f32 %v635, %v970
    %v997 = vadd.f32 %v636, %v977
    %v998 = vadd.f32 %v637, %v984
    %v999 = vadd.f32 %v638, %v991
    %vm1002 = vcmask 1045504
    %v1003 = vrot.slane %v38, 2
    %v1004 = vrot.slane %v39, 2
    %v1005 = vsel %vm1002, %v1003, %v1004
    %v1007 = vadd.f32 %v996, %v1005
    %v1008 = vadd.f32 %v997, %v1005
    %v1009 = vadd.f32 %v998, %v1005
    %v1010 = vadd.f32 %v999, %v1005
    %vm1011 = vcmask 64512
    %v1012 = vsel %vm1011, %v1007, -inf
    %1013 = vmax.xlane.f32.xlu0 %v1012
    %v1014 = vpop.xlane.xlu0 %1013
    %v1015 = vsel %vm1011, %v1008, -inf
    %1016 = vmax.xlane.f32.xlu0 %v1015
    %v1017 = vpop.xlane.xlu0 %1016
    %v1018 = vsel %vm1011, %v1009, -inf
    %1019 = vmax.xlane.f32.xlu0 %v1018
    %v1020 = vpop.xlane.xlu0 %1019
    %v1021 = vsel %vm1011, %v1010, -inf
    %1022 = vmax.xlane.f32.xlu0 %v1021
    %v1023 = vpop.xlane.xlu0 %1022
    %v1024 = vsub.f32 %v1007, %v1014
    %v1025 = vsub.f32 %v1008, %v1017
    %v1026 = vsub.f32 %v1009, %v1020
    %v1027 = vsub.f32 %v1010, %v1023
    %v1028 = vmul.f32 %v1024, 1.442695
    %v1029 = vpow.pop %v1028
    %v1030 = vmul.f32 %v1025, 1.442695
    %v1031 = vpow.pop %v1030
    %v1032 = vmul.f32 %v1026, 1.442695
    %v1033 = vpow.pop %v1032
    %v1034 = vmul.f32 %v1027, 1.442695
    %v1035 = vpow.pop %v1034
    %v1036 = vsel %vm1011, %v1029, 0.0
    %1037 = vadd.xlane.f32.xlu0 %v1036
    %v1038 = vpop.xlane.xlu0 %1037
    %v1039 = vsel %vm1011, %v1031, 0.0
    %1040 = vadd.xlane.f32.xlu0 %v1039
    %v1041 = vpop.xlane.xlu0 %1040
    %v1042 = vsel %vm1011, %v1033, 0.0
    %1043 = vadd.xlane.f32.xlu0 %v1042
    %v1044 = vpop.xlane.xlu0 %1043
    %v1045 = vsel %vm1011, %v1035, 0.0
    %1046 = vadd.xlane.f32.xlu0 %v1045
    %v1047 = vpop.xlane.xlu0 %1046
    %v1048 = vrcp.pop %v1038
    %v1049 = vmul.f32 %v1029, %v1048
    %v1050 = vrcp.pop %v1041
    %v1051 = vmul.f32 %v1031, %v1050
    %v1052 = vrcp.pop %v1044
    %v1053 = vmul.f32 %v1033, %v1052
    %v1054 = vrcp.pop %v1047
    %v1055 = vmul.f32 %v1035, %v1054
    %v1056 = vld [vmem:[%s1] sm:$0xff]
    %v1057 = vld [vmem:[%s1 + $0x8] sm:$0xff]
    %v1058 = vld [vmem:[%s1 + $0x10] sm:$0xff]
    %v1059 = vld [vmem:[%s1 + $0x18] sm:$0xff]
    %v1060 = vlaneseq
    %v1061 = vshrl.u32 %v1060, 7
    %v1062 = vsub.s32 0, %v1061
    %v1063 = vrot.slane %v1049, %v1062
    %1065 = vbcast.lane.b32.xlu0 %v1063, 256
    %v1066 = vpop.permute.xlu0 %1065
    %v1067 = vlaneseq
    %v1068 = vshrl.u32 %v1067, 7
    %v1069 = vsub.s32 1, %v1068
    %v1070 = vrot.slane %v1049, %v1069
    %1072 = vbcast.lane.b32.xlu0 %v1070, 256
    %v1073 = vpop.permute.xlu0 %1072
    %v1074 = vlaneseq
    %v1075 = vshrl.u32 %v1074, 7
    %v1076 = vsub.s32 2, %v1075
    %v1077 = vrot.slane %v1049, %v1076
    %1079 = vbcast.lane.b32.xlu0 %v1077, 256
    %v1080 = vpop.permute.xlu0 %1079
    %v1081 = vlaneseq
    %v1082 = vshrl.u32 %v1081, 7
    %v1083 = vsub.s32 3, %v1082
    %v1084 = vrot.slane %v1049, %v1083
    %1086 = vbcast.lane.b32.xlu0 %v1084, 256
    %v1087 = vpop.permute.xlu0 %1086
    %v1088 = vlaneseq
    %v1089 = vshrl.u32 %v1088, 7
    %v1090 = vsub.s32 4, %v1089
    %v1091 = vrot.slane %v1049, %v1090
    %1093 = vbcast.lane.b32.xlu0 %v1091, 256
    %v1094 = vpop.permute.xlu0 %1093
    %v1095 = vlaneseq
    %v1096 = vshrl.u32 %v1095, 7
    %v1097 = vsub.s32 5, %v1096
    %v1098 = vrot.slane %v1049, %v1097
    %1100 = vbcast.lane.b32.xlu0 %v1098, 256
    %v1101 = vpop.permute.xlu0 %1100
    %v1102 = vlaneseq
    %v1103 = vshrl.u32 %v1102, 7
    %v1104 = vsub.s32 6, %v1103
    %v1105 = vrot.slane %v1049, %v1104
    %1107 = vbcast.lane.b32.xlu0 %v1105, 256
    %v1108 = vpop.permute.xlu0 %1107
    %v1109 = vlaneseq
    %v1110 = vshrl.u32 %v1109, 7
    %v1111 = vsub.s32 7, %v1110
    %v1112 = vrot.slane %v1049, %v1111
    %1114 = vbcast.lane.b32.xlu0 %v1112, 256
    %v1115 = vpop.permute.xlu0 %1114
    %v1116 = vlaneseq
    %v1117 = vshrl.u32 %v1116, 7
    %v1118 = vsub.s32 0, %v1117
    %v1119 = vrot.slane %v1051, %v1118
    %1121 = vbcast.lane.b32.xlu0 %v1119, 256
    %v1122 = vpop.permute.xlu0 %1121
    %v1123 = vlaneseq
    %v1124 = vshrl.u32 %v1123, 7
    %v1125 = vsub.s32 1, %v1124
    %v1126 = vrot.slane %v1051, %v1125
    %1128 = vbcast.lane.b32.xlu0 %v1126, 256
    %v1129 = vpop.permute.xlu0 %1128
    %v1130 = vlaneseq
    %v1131 = vshrl.u32 %v1130, 7
    %v1132 = vsub.s32 2, %v1131
    %v1133 = vrot.slane %v1051, %v1132
    %1135 = vbcast.lane.b32.xlu0 %v1133, 256
    %v1136 = vpop.permute.xlu0 %1135
    %v1137 = vlaneseq
    %v1138 = vshrl.u32 %v1137, 7
    %v1139 = vsub.s32 3, %v1138
    %v1140 = vrot.slane %v1051, %v1139
    %1142 = vbcast.lane.b32.xlu0 %v1140, 256
    %v1143 = vpop.permute.xlu0 %1142
    %v1144 = vlaneseq
    %v1145 = vshrl.u32 %v1144, 7
    %v1146 = vsub.s32 4, %v1145
    %v1147 = vrot.slane %v1051, %v1146
    %1149 = vbcast.lane.b32.xlu0 %v1147, 256
    %v1150 = vpop.permute.xlu0 %1149
    %v1151 = vlaneseq
    %v1152 = vshrl.u32 %v1151, 7
    %v1153 = vsub.s32 5, %v1152
    %v1154 = vrot.slane %v1051, %v1153
    %1156 = vbcast.lane.b32.xlu0 %v1154, 256
    %v1157 = vpop.permute.xlu0 %1156
    %v1158 = vlaneseq
    %v1159 = vshrl.u32 %v1158, 7
    %v1160 = vsub.s32 6, %v1159
    %v1161 = vrot.slane %v1051, %v1160
    %1163 = vbcast.lane.b32.xlu0 %v1161, 256
    %v1164 = vpop.permute.xlu0 %1163
    %v1165 = vlaneseq
    %v1166 = vshrl.u32 %v1165, 7
    %v1167 = vsub.s32 7, %v1166
    %v1168 = vrot.slane %v1051, %v1167
    %1170 = vbcast.lane.b32.xlu0 %v1168, 256
    %v1171 = vpop.permute.xlu0 %1170
    %v1172 = vlaneseq
    %v1173 = vshrl.u32 %v1172, 7
    %v1174 = vsub.s32 0, %v1173
    %v1175 = vrot.slane %v1053, %v1174
    %1177 = vbcast.lane.b32.xlu0 %v1175, 256
    %v1178 = vpop.permute.xlu0 %1177
    %v1179 = vlaneseq
    %v1180 = vshrl.u32 %v1179, 7
    %v1181 = vsub.s32 1, %v1180
    %v1182 = vrot.slane %v1053, %v1181
    %1184 = vbcast.lane.b32.xlu0 %v1182, 256
    %v1185 = vpop.permute.xlu0 %1184
    %v1186 = vlaneseq
    %v1187 = vshrl.u32 %v1186, 7
    %v1188 = vsub.s32 2, %v1187
    %v1189 = vrot.slane %v1053, %v1188
    %1191 = vbcast.lane.b32.xlu0 %v1189, 256
    %v1192 = vpop.permute.xlu0 %1191
    %v1193 = vlaneseq
    %v1194 = vshrl.u32 %v1193, 7
    %v1195 = vsub.s32 3, %v1194
    %v1196 = vrot.slane %v1053, %v1195
    %1198 = vbcast.lane.b32.xlu0 %v1196, 256
    %v1199 = vpop.permute.xlu0 %1198
    %v1200 = vlaneseq
    %v1201 = vshrl.u32 %v1200, 7
    %v1202 = vsub.s32 4, %v1201
    %v1203 = vrot.slane %v1053, %v1202
    %1205 = vbcast.lane.b32.xlu0 %v1203, 256
    %v1206 = vpop.permute.xlu0 %1205
    %v1207 = vlaneseq
    %v1208 = vshrl.u32 %v1207, 7
    %v1209 = vsub.s32 5, %v1208
    %v1210 = vrot.slane %v1053, %v1209
    %1212 = vbcast.lane.b32.xlu0 %v1210, 256
    %v1213 = vpop.permute.xlu0 %1212
    %v1214 = vlaneseq
    %v1215 = vshrl.u32 %v1214, 7
    %v1216 = vsub.s32 6, %v1215
    %v1217 = vrot.slane %v1053, %v1216
    %1219 = vbcast.lane.b32.xlu0 %v1217, 256
    %v1220 = vpop.permute.xlu0 %1219
    %v1221 = vlaneseq
    %v1222 = vshrl.u32 %v1221, 7
    %v1223 = vsub.s32 7, %v1222
    %v1224 = vrot.slane %v1053, %v1223
    %1226 = vbcast.lane.b32.xlu0 %v1224, 256
    %v1227 = vpop.permute.xlu0 %1226
    %v1228 = vlaneseq
    %v1229 = vshrl.u32 %v1228, 7
    %v1230 = vsub.s32 0, %v1229
    %v1231 = vrot.slane %v1055, %v1230
    %1233 = vbcast.lane.b32.xlu0 %v1231, 256
    %v1234 = vpop.permute.xlu0 %1233
    %v1235 = vlaneseq
    %v1236 = vshrl.u32 %v1235, 7
    %v1237 = vsub.s32 1, %v1236
    %v1238 = vrot.slane %v1055, %v1237
    %1240 = vbcast.lane.b32.xlu0 %v1238, 256
    %v1241 = vpop.permute.xlu0 %1240
    %v1242 = vlaneseq
    %v1243 = vshrl.u32 %v1242, 7
    %v1244 = vsub.s32 2, %v1243
    %v1245 = vrot.slane %v1055, %v1244
    %1247 = vbcast.lane.b32.xlu0 %v1245, 256
    %v1248 = vpop.permute.xlu0 %1247
    %v1249 = vlaneseq
    %v1250 = vshrl.u32 %v1249, 7
    %v1251 = vsub.s32 3, %v1250
    %v1252 = vrot.slane %v1055, %v1251
    %1254 = vbcast.lane.b32.xlu0 %v1252, 256
    %v1255 = vpop.permute.xlu0 %1254
    %v1256 = vlaneseq
    %v1257 = vshrl.u32 %v1256, 7
    %v1258 = vsub.s32 4, %v1257
    %v1259 = vrot.slane %v1055, %v1258
    %1261 = vbcast.lane.b32.xlu0 %v1259, 256
    %v1262 = vpop.permute.xlu0 %1261
    %v1263 = vlaneseq
    %v1264 = vshrl.u32 %v1263, 7
    %v1265 = vsub.s32 5, %v1264
    %v1266 = vrot.slane %v1055, %v1265
    %1268 = vbcast.lane.b32.xlu0 %v1266, 256
    %v1269 = vpop.permute.xlu0 %1268
    %v1270 = vlaneseq
    %v1271 = vshrl.u32 %v1270, 7
    %v1272 = vsub.s32 6, %v1271
    %v1273 = vrot.slane %v1055, %v1272
    %1275 = vbcast.lane.b32.xlu0 %v1273, 256
    %v1276 = vpop.permute.xlu0 %1275
    %v1277 = vlaneseq
    %v1278 = vshrl.u32 %v1277, 7
    %v1279 = vsub.s32 7, %v1278
    %v1280 = vrot.slane %v1055, %v1279
    %1282 = vbcast.lane.b32.xlu0 %v1280, 256
    %v1283 = vpop.permute.xlu0 %1282
    %v1284 = vmul.f32 %v1066, %v1056
    %v1285 = vmul.f32 %v1073, %v1056
    %v1286 = vmul.f32 %v1080, %v1056
    %v1287 = vmul.f32 %v1087, %v1056
    %v1288 = vmul.f32 %v1094, %v1056
    %v1289 = vmul.f32 %v1101, %v1056
    %v1290 = vmul.f32 %v1108, %v1056
    %v1291 = vmul.f32 %v1115, %v1056
    %v1292 = vmul.f32 %v1122, %v1057
    %v1293 = vmul.f32 %v1129, %v1057
    %v1294 = vmul.f32 %v1136, %v1057
    %v1295 = vmul.f32 %v1143, %v1057
    %v1296 = vmul.f32 %v1150, %v1057
    %v1297 = vmul.f32 %v1157, %v1057
    %v1298 = vmul.f32 %v1164, %v1057
    %v1299 = vmul.f32 %v1171, %v1057
    %v1300 = vmul.f32 %v1178, %v1058
    %v1301 = vmul.f32 %v1185, %v1058
    %v1302 = vmul.f32 %v1192, %v1058
    %v1303 = vmul.f32 %v1199, %v1058
    %v1304 = vmul.f32 %v1206, %v1058
    %v1305 = vmul.f32 %v1213, %v1058
    %v1306 = vmul.f32 %v1220, %v1058
    %v1307 = vmul.f32 %v1227, %v1058
    %v1308 = vmul.f32 %v1234, %v1059
    %v1309 = vmul.f32 %v1241, %v1059
    %v1310 = vmul.f32 %v1248, %v1059
    %v1311 = vmul.f32 %v1255, %v1059
    %v1312 = vmul.f32 %v1262, %v1059
    %v1313 = vmul.f32 %v1269, %v1059
    %v1314 = vmul.f32 %v1276, %v1059
    %v1315 = vmul.f32 %v1283, %v1059
    %v1316 = vsel %vm40, %v1284, 0.0
    %v1317 = vrot.slane %v1316, 4
    %v1318 = vadd.f32 %v1316, %v1317
    %v1319 = vrot.slane %v1318, 2
    %v1320 = vadd.f32 %v1318, %v1319
    %v1321 = vrot.slane %v1320, 1
    %v1322 = vadd.f32 %v1320, %v1321
    %v1323 = vsel %vm40, %v1285, 0.0
    %v1324 = vrot.slane %v1323, 4
    %v1325 = vadd.f32 %v1323, %v1324
    %v1326 = vrot.slane %v1325, 2
    %v1327 = vadd.f32 %v1325, %v1326
    %v1328 = vrot.slane %v1327, 1
    %v1329 = vadd.f32 %v1327, %v1328
    %v1330 = vsel %vm40, %v1286, 0.0
    %v1331 = vrot.slane %v1330, 4
    %v1332 = vadd.f32 %v1330, %v1331
    %v1333 = vrot.slane %v1332, 2
    %v1334 = vadd.f32 %v1332, %v1333
    %v1335 = vrot.slane %v1334, 1
    %v1336 = vadd.f32 %v1334, %v1335
    %v1337 = vsel %vm40, %v1287, 0.0
    %v1338 = vrot.slane %v1337, 4
    %v1339 = vadd.f32 %v1337, %v1338
    %v1340 = vrot.slane %v1339, 2
    %v1341 = vadd.f32 %v1339, %v1340
    %v1342 = vrot.slane %v1341, 1
    %v1343 = vadd.f32 %v1341, %v1342
    %v1344 = vsel %vm40, %v1288, 0.0
    %v1345 = vrot.slane %v1344, 4
    %v1346 = vadd.f32 %v1344, %v1345
    %v1347 = vrot.slane %v1346, 2
    %v1348 = vadd.f32 %v1346, %v1347
    %v1349 = vrot.slane %v1348, 1
    %v1350 = vadd.f32 %v1348, %v1349
    %v1351 = vsel %vm40, %v1289, 0.0
    %v1352 = vrot.slane %v1351, 4
    %v1353 = vadd.f32 %v1351, %v1352
    %v1354 = vrot.slane %v1353, 2
    %v1355 = vadd.f32 %v1353, %v1354
    %v1356 = vrot.slane %v1355, 1
    %v1357 = vadd.f32 %v1355, %v1356
    %v1358 = vsel %vm40, %v1290, 0.0
    %v1359 = vrot.slane %v1358, 4
    %v1360 = vadd.f32 %v1358, %v1359
    %v1361 = vrot.slane %v1360, 2
    %v1362 = vadd.f32 %v1360, %v1361
    %v1363 = vrot.slane %v1362, 1
    %v1364 = vadd.f32 %v1362, %v1363
    %v1365 = vsel %vm40, %v1291, 0.0
    %v1366 = vrot.slane %v1365, 4
    %v1367 = vadd.f32 %v1365, %v1366
    %v1368 = vrot.slane %v1367, 2
    %v1369 = vadd.f32 %v1367, %v1368
    %v1370 = vrot.slane %v1369, 1
    %v1371 = vadd.f32 %v1369, %v1370
    %v1372 = vsel %vm40, %v1292, 0.0
    %v1373 = vrot.slane %v1372, 4
    %v1374 = vadd.f32 %v1372, %v1373
    %v1375 = vrot.slane %v1374, 2
    %v1376 = vadd.f32 %v1374, %v1375
    %v1377 = vrot.slane %v1376, 1
    %v1378 = vadd.f32 %v1376, %v1377
    %v1379 = vsel %vm40, %v1293, 0.0
    %v1380 = vrot.slane %v1379, 4
    %v1381 = vadd.f32 %v1379, %v1380
    %v1382 = vrot.slane %v1381, 2
    %v1383 = vadd.f32 %v1381, %v1382
    %v1384 = vrot.slane %v1383, 1
    %v1385 = vadd.f32 %v1383, %v1384
    %v1386 = vsel %vm40, %v1294, 0.0
    %v1387 = vrot.slane %v1386, 4
    %v1388 = vadd.f32 %v1386, %v1387
    %v1389 = vrot.slane %v1388, 2
    %v1390 = vadd.f32 %v1388, %v1389
    %v1391 = vrot.slane %v1390, 1
    %v1392 = vadd.f32 %v1390, %v1391
    %v1393 = vsel %vm40, %v1295, 0.0
    %v1394 = vrot.slane %v1393, 4
    %v1395 = vadd.f32 %v1393, %v1394
    %v1396 = vrot.slane %v1395, 2
    %v1397 = vadd.f32 %v1395, %v1396
    %v1398 = vrot.slane %v1397, 1
    %v1399 = vadd.f32 %v1397, %v1398
    %v1400 = vsel %vm40, %v1296, 0.0
    %v1401 = vrot.slane %v1400, 4
    %v1402 = vadd.f32 %v1400, %v1401
    %v1403 = vrot.slane %v1402, 2
    %v1404 = vadd.f32 %v1402, %v1403
    %v1405 = vrot.slane %v1404, 1
    %v1406 = vadd.f32 %v1404, %v1405
    %v1407 = vsel %vm40, %v1297, 0.0
    %v1408 = vrot.slane %v1407, 4
    %v1409 = vadd.f32 %v1407, %v1408
    %v1410 = vrot.slane %v1409, 2
    %v1411 = vadd.f32 %v1409, %v1410
    %v1412 = vrot.slane %v1411, 1
    %v1413 = vadd.f32 %v1411, %v1412
    %v1414 = vsel %vm40, %v1298, 0.0
    %v1415 = vrot.slane %v1414, 4
    %v1416 = vadd.f32 %v1414, %v1415
    %v1417 = vrot.slane %v1416, 2
    %v1418 = vadd.f32 %v1416, %v1417
    %v1419 = vrot.slane %v1418, 1
    %v1420 = vadd.f32 %v1418, %v1419
    %v1421 = vsel %vm40, %v1299, 0.0
    %v1422 = vrot.slane %v1421, 4
    %v1423 = vadd.f32 %v1421, %v1422
    %v1424 = vrot.slane %v1423, 2
    %v1425 = vadd.f32 %v1423, %v1424
    %v1426 = vrot.slane %v1425, 1
    %v1427 = vadd.f32 %v1425, %v1426
    %v1428 = vsel %vm40, %v1300, 0.0
    %v1429 = vrot.slane %v1428, 4
    %v1430 = vadd.f32 %v1428, %v1429
    %v1431 = vrot.slane %v1430, 2
    %v1432 = vadd.f32 %v1430, %v1431
    %v1433 = vrot.slane %v1432, 1
    %v1434 = vadd.f32 %v1432, %v1433
    %v1435 = vsel %vm40, %v1301, 0.0
    %v1436 = vrot.slane %v1435, 4
    %v1437 = vadd.f32 %v1435, %v1436
    %v1438 = vrot.slane %v1437, 2
    %v1439 = vadd.f32 %v1437, %v1438
    %v1440 = vrot.slane %v1439, 1
    %v1441 = vadd.f32 %v1439, %v1440
    %v1442 = vsel %vm40, %v1302, 0.0
    %v1443 = vrot.slane %v1442, 4
    %v1444 = vadd.f32 %v1442, %v1443
    %v1445 = vrot.slane %v1444, 2
    %v1446 = vadd.f32 %v1444, %v1445
    %v1447 = vrot.slane %v1446, 1
    %v1448 = vadd.f32 %v1446, %v1447
    %v1449 = vsel %vm40, %v1303, 0.0
    %v1450 = vrot.slane %v1449, 4
    %v1451 = vadd.f32 %v1449, %v1450
    %v1452 = vrot.slane %v1451, 2
    %v1453 = vadd.f32 %v1451, %v1452
    %v1454 = vrot.slane %v1453, 1
    %v1455 = vadd.f32 %v1453, %v1454
    %v1456 = vsel %vm40, %v1304, 0.0
    %v1457 = vrot.slane %v1456, 4
    %v1458 = vadd.f32 %v1456, %v1457
    %v1459 = vrot.slane %v1458, 2
    %v1460 = vadd.f32 %v1458, %v1459
    %v1461 = vrot.slane %v1460, 1
    %v1462 = vadd.f32 %v1460, %v1461
    %v1463 = vsel %vm40, %v1305, 0.0
    %v1464 = vrot.slane %v1463, 4
    %v1465 = vadd.f32 %v1463, %v1464
    %v1466 = vrot.slane %v1465, 2
    %v1467 = vadd.f32 %v1465, %v1466
    %v1468 = vrot.slane %v1467, 1
    %v1469 = vadd.f32 %v1467, %v1468
    %v1470 = vsel %vm40, %v1306, 0.0
    %v1471 = vrot.slane %v1470, 4
    %v1472 = vadd.f32 %v1470, %v1471
    %v1473 = vrot.slane %v1472, 2
    %v1474 = vadd.f32 %v1472, %v1473
    %v1475 = vrot.slane %v1474, 1
    %v1476 = vadd.f32 %v1474, %v1475
    %v1477 = vsel %vm40, %v1307, 0.0
    %v1478 = vrot.slane %v1477, 4
    %v1479 = vadd.f32 %v1477, %v1478
    %v1480 = vrot.slane %v1479, 2
    %v1481 = vadd.f32 %v1479, %v1480
    %v1482 = vrot.slane %v1481, 1
    %v1483 = vadd.f32 %v1481, %v1482
    %v1484 = vsel %vm40, %v1308, 0.0
    %v1485 = vrot.slane %v1484, 4
    %v1486 = vadd.f32 %v1484, %v1485
    %v1487 = vrot.slane %v1486, 2
    %v1488 = vadd.f32 %v1486, %v1487
    %v1489 = vrot.slane %v1488, 1
    %v1490 = vadd.f32 %v1488, %v1489
    %v1491 = vsel %vm40, %v1309, 0.0
    %v1492 = vrot.slane %v1491, 4
    %v1493 = vadd.f32 %v1491, %v1492
    %v1494 = vrot.slane %v1493, 2
    %v1495 = vadd.f32 %v1493, %v1494
    %v1496 = vrot.slane %v1495, 1
    %v1497 = vadd.f32 %v1495, %v1496
    %v1498 = vsel %vm40, %v1310, 0.0
    %v1499 = vrot.slane %v1498, 4
    %v1500 = vadd.f32 %v1498, %v1499
    %v1501 = vrot.slane %v1500, 2
    %v1502 = vadd.f32 %v1500, %v1501
    %v1503 = vrot.slane %v1502, 1
    %v1504 = vadd.f32 %v1502, %v1503
    %v1505 = vsel %vm40, %v1311, 0.0
    %v1506 = vrot.slane %v1505, 4
    %v1507 = vadd.f32 %v1505, %v1506
    %v1508 = vrot.slane %v1507, 2
    %v1509 = vadd.f32 %v1507, %v1508
    %v1510 = vrot.slane %v1509, 1
    %v1511 = vadd.f32 %v1509, %v1510
    %v1512 = vsel %vm40, %v1312, 0.0
    %v1513 = vrot.slane %v1512, 4
    %v1514 = vadd.f32 %v1512, %v1513
    %v1515 = vrot.slane %v1514, 2
    %v1516 = vadd.f32 %v1514, %v1515
    %v1517 = vrot.slane %v1516, 1
    %v1518 = vadd.f32 %v1516, %v1517
    %v1519 = vsel %vm40, %v1313, 0.0
    %v1520 = vrot.slane %v1519, 4
    %v1521 = vadd.f32 %v1519, %v1520
    %v1522 = vrot.slane %v1521, 2
    %v1523 = vadd.f32 %v1521, %v1522
    %v1524 = vrot.slane %v1523, 1
    %v1525 = vadd.f32 %v1523, %v1524
    %v1526 = vsel %vm40, %v1314, 0.0
    %v1527 = vrot.slane %v1526, 4
    %v1528 = vadd.f32 %v1526, %v1527
    %v1529 = vrot.slane %v1528, 2
    %v1530 = vadd.f32 %v1528, %v1529
    %v1531 = vrot.slane %v1530, 1
    %v1532 = vadd.f32 %v1530, %v1531
    %v1533 = vsel %vm40, %v1315, 0.0
    %v1534 = vrot.slane %v1533, 4
    %v1535 = vadd.f32 %v1533, %v1534
    %v1536 = vrot.slane %v1535, 2
    %v1537 = vadd.f32 %v1535, %v1536
    %v1538 = vrot.slane %v1537, 1
    %v1539 = vadd.f32 %v1537, %v1538
    %v1540 = vxor.u32 %v1322, 2147483648
    %v1541 = vxor.u32 %v1329, 2147483648
    %v1542 = vxor.u32 %v1336, 2147483648
    %v1543 = vxor.u32 %v1343, 2147483648
    %v1544 = vxor.u32 %v1350, 2147483648
    %v1545 = vxor.u32 %v1357, 2147483648
    %v1546 = vxor.u32 %v1364, 2147483648
    %v1547 = vxor.u32 %v1371, 2147483648
    %v1548 = vxor.u32 %v1378, 2147483648
    %v1549 = vxor.u32 %v1385, 2147483648
    %v1550 = vxor.u32 %v1392, 2147483648
    %v1551 = vxor.u32 %v1399, 2147483648
    %v1552 = vxor.u32 %v1406, 2147483648
    %v1553 = vxor.u32 %v1413, 2147483648
    %v1554 = vxor.u32 %v1420, 2147483648
    %v1555 = vxor.u32 %v1427, 2147483648
    %v1556 = vxor.u32 %v1434, 2147483648
    %v1557 = vxor.u32 %v1441, 2147483648
    %v1558 = vxor.u32 %v1448, 2147483648
    %v1559 = vxor.u32 %v1455, 2147483648
    %v1560 = vxor.u32 %v1462, 2147483648
    %v1561 = vxor.u32 %v1469, 2147483648
    %v1562 = vxor.u32 %v1476, 2147483648
    %v1563 = vxor.u32 %v1483, 2147483648
    %v1564 = vxor.u32 %v1490, 2147483648
    %v1565 = vxor.u32 %v1497, 2147483648
    %v1566 = vxor.u32 %v1504, 2147483648
    %v1567 = vxor.u32 %v1511, 2147483648
    %v1568 = vxor.u32 %v1518, 2147483648
    %v1569 = vxor.u32 %v1525, 2147483648
    %v1570 = vxor.u32 %v1532, 2147483648
    %v1571 = vxor.u32 %v1539, 2147483648
    %v1572 = vmul.f32 %v1540, 1.442695
    %v1573 = vpow.pop %v1572
    %v1574 = vmul.f32 %v1541, 1.442695
    %v1575 = vpow.pop %v1574
    %v1576 = vmul.f32 %v1542, 1.442695
    %v1577 = vpow.pop %v1576
    %v1578 = vmul.f32 %v1543, 1.442695
    %v1579 = vpow.pop %v1578
    %v1580 = vmul.f32 %v1544, 1.442695
    %v1581 = vpow.pop %v1580
    %v1582 = vmul.f32 %v1545, 1.442695
    %v1583 = vpow.pop %v1582
    %v1584 = vmul.f32 %v1546, 1.442695
    %v1585 = vpow.pop %v1584
    %v1586 = vmul.f32 %v1547, 1.442695
    %v1587 = vpow.pop %v1586
    %v1588 = vmul.f32 %v1548, 1.442695
    %v1589 = vpow.pop %v1588
    %v1590 = vmul.f32 %v1549, 1.442695
    %v1591 = vpow.pop %v1590
    %v1592 = vmul.f32 %v1550, 1.442695
    %v1593 = vpow.pop %v1592
    %v1594 = vmul.f32 %v1551, 1.442695
    %v1595 = vpow.pop %v1594
    %v1596 = vmul.f32 %v1552, 1.442695
    %v1597 = vpow.pop %v1596
    %v1598 = vmul.f32 %v1553, 1.442695
    %v1599 = vpow.pop %v1598
    %v1600 = vmul.f32 %v1554, 1.442695
    %v1601 = vpow.pop %v1600
    %v1602 = vmul.f32 %v1555, 1.442695
    %v1603 = vpow.pop %v1602
    %v1604 = vmul.f32 %v1556, 1.442695
    %v1605 = vpow.pop %v1604
    %v1606 = vmul.f32 %v1557, 1.442695
    %v1607 = vpow.pop %v1606
    %v1608 = vmul.f32 %v1558, 1.442695
    %v1609 = vpow.pop %v1608
    %v1610 = vmul.f32 %v1559, 1.442695
    %v1611 = vpow.pop %v1610
    %v1612 = vmul.f32 %v1560, 1.442695
    %v1613 = vpow.pop %v1612
    %v1614 = vmul.f32 %v1561, 1.442695
    %v1615 = vpow.pop %v1614
    %v1616 = vmul.f32 %v1562, 1.442695
    %v1617 = vpow.pop %v1616
    %v1618 = vmul.f32 %v1563, 1.442695
    %v1619 = vpow.pop %v1618
    %v1620 = vmul.f32 %v1564, 1.442695
    %v1621 = vpow.pop %v1620
    %v1622 = vmul.f32 %v1565, 1.442695
    %v1623 = vpow.pop %v1622
    %v1624 = vmul.f32 %v1566, 1.442695
    %v1625 = vpow.pop %v1624
    %v1626 = vmul.f32 %v1567, 1.442695
    %v1627 = vpow.pop %v1626
    %v1628 = vmul.f32 %v1568, 1.442695
    %v1629 = vpow.pop %v1628
    %v1630 = vmul.f32 %v1569, 1.442695
    %v1631 = vpow.pop %v1630
    %v1632 = vmul.f32 %v1570, 1.442695
    %v1633 = vpow.pop %v1632
    %v1634 = vmul.f32 %v1571, 1.442695
    %v1635 = vpow.pop %v1634
    %v1636 = vadd.f32 %v1573, 1.0
    %v1637 = vadd.f32 %v1575, 1.0
    %v1638 = vadd.f32 %v1577, 1.0
    %v1639 = vadd.f32 %v1579, 1.0
    %v1640 = vadd.f32 %v1581, 1.0
    %v1641 = vadd.f32 %v1583, 1.0
    %v1642 = vadd.f32 %v1585, 1.0
    %v1643 = vadd.f32 %v1587, 1.0
    %v1644 = vadd.f32 %v1589, 1.0
    %v1645 = vadd.f32 %v1591, 1.0
    %v1646 = vadd.f32 %v1593, 1.0
    %v1647 = vadd.f32 %v1595, 1.0
    %v1648 = vadd.f32 %v1597, 1.0
    %v1649 = vadd.f32 %v1599, 1.0
    %v1650 = vadd.f32 %v1601, 1.0
    %v1651 = vadd.f32 %v1603, 1.0
    %v1652 = vadd.f32 %v1605, 1.0
    %v1653 = vadd.f32 %v1607, 1.0
    %v1654 = vadd.f32 %v1609, 1.0
    %v1655 = vadd.f32 %v1611, 1.0
    %v1656 = vadd.f32 %v1613, 1.0
    %v1657 = vadd.f32 %v1615, 1.0
    %v1658 = vadd.f32 %v1617, 1.0
    %v1659 = vadd.f32 %v1619, 1.0
    %v1660 = vadd.f32 %v1621, 1.0
    %v1661 = vadd.f32 %v1623, 1.0
    %v1662 = vadd.f32 %v1625, 1.0
    %v1663 = vadd.f32 %v1627, 1.0
    %v1664 = vadd.f32 %v1629, 1.0
    %v1665 = vadd.f32 %v1631, 1.0
    %v1666 = vadd.f32 %v1633, 1.0
    %v1667 = vadd.f32 %v1635, 1.0
    %v1668 = vrcp.pop %v1636
    %v1669 = vmul.f32 1.0, %v1668
    %v1670 = vrcp.pop %v1637
    %v1671 = vmul.f32 1.0, %v1670
    %v1672 = vrcp.pop %v1638
    %v1673 = vmul.f32 1.0, %v1672
    %v1674 = vrcp.pop %v1639
    %v1675 = vmul.f32 1.0, %v1674
    %v1676 = vrcp.pop %v1640
    %v1677 = vmul.f32 1.0, %v1676
    %v1678 = vrcp.pop %v1641
    %v1679 = vmul.f32 1.0, %v1678
    %v1680 = vrcp.pop %v1642
    %v1681 = vmul.f32 1.0, %v1680
    %v1682 = vrcp.pop %v1643
    %v1683 = vmul.f32 1.0, %v1682
    %v1684 = vrcp.pop %v1644
    %v1685 = vmul.f32 1.0, %v1684
    %v1686 = vrcp.pop %v1645
    %v1687 = vmul.f32 1.0, %v1686
    %v1688 = vrcp.pop %v1646
    %v1689 = vmul.f32 1.0, %v1688
    %v1690 = vrcp.pop %v1647
    %v1691 = vmul.f32 1.0, %v1690
    %v1692 = vrcp.pop %v1648
    %v1693 = vmul.f32 1.0, %v1692
    %v1694 = vrcp.pop %v1649
    %v1695 = vmul.f32 1.0, %v1694
    %v1696 = vrcp.pop %v1650
    %v1697 = vmul.f32 1.0, %v1696
    %v1698 = vrcp.pop %v1651
    %v1699 = vmul.f32 1.0, %v1698
    %v1700 = vrcp.pop %v1652
    %v1701 = vmul.f32 1.0, %v1700
    %v1702 = vrcp.pop %v1653
    %v1703 = vmul.f32 1.0, %v1702
    %v1704 = vrcp.pop %v1654
    %v1705 = vmul.f32 1.0, %v1704
    %v1706 = vrcp.pop %v1655
    %v1707 = vmul.f32 1.0, %v1706
    %v1708 = vrcp.pop %v1656
    %v1709 = vmul.f32 1.0, %v1708
    %v1710 = vrcp.pop %v1657
    %v1711 = vmul.f32 1.0, %v1710
    %v1712 = vrcp.pop %v1658
    %v1713 = vmul.f32 1.0, %v1712
    %v1714 = vrcp.pop %v1659
    %v1715 = vmul.f32 1.0, %v1714
    %v1716 = vrcp.pop %v1660
    %v1717 = vmul.f32 1.0, %v1716
    %v1718 = vrcp.pop %v1661
    %v1719 = vmul.f32 1.0, %v1718
    %v1720 = vrcp.pop %v1662
    %v1721 = vmul.f32 1.0, %v1720
    %v1722 = vrcp.pop %v1663
    %v1723 = vmul.f32 1.0, %v1722
    %v1724 = vrcp.pop %v1664
    %v1725 = vmul.f32 1.0, %v1724
    %v1726 = vrcp.pop %v1665
    %v1727 = vmul.f32 1.0, %v1726
    %v1728 = vrcp.pop %v1666
    %v1729 = vmul.f32 1.0, %v1728
    %v1730 = vrcp.pop %v1667
    %v1731 = vmul.f32 1.0, %v1730
    %v1764 = vsel %vm600, %v1671, %v1669
    %v1765 = vsel %vm601, %v1673, %v1764
    %v1766 = vsel %vm603, %v1675, %v1765
    %v1767 = vsel %vm605, %v1677, %v1766
    %v1768 = vsel %vm607, %v1679, %v1767
    %v1769 = vsel %vm609, %v1681, %v1768
    %v1770 = vsel %vm611, %v1683, %v1769
    %v1771 = vsel %vm600, %v1687, %v1685
    %v1772 = vsel %vm601, %v1689, %v1771
    %v1773 = vsel %vm603, %v1691, %v1772
    %v1774 = vsel %vm605, %v1693, %v1773
    %v1775 = vsel %vm607, %v1695, %v1774
    %v1776 = vsel %vm609, %v1697, %v1775
    %v1777 = vsel %vm611, %v1699, %v1776
    %v1778 = vsel %vm600, %v1703, %v1701
    %v1779 = vsel %vm601, %v1705, %v1778
    %v1780 = vsel %vm603, %v1707, %v1779
    %v1781 = vsel %vm605, %v1709, %v1780
    %v1782 = vsel %vm607, %v1711, %v1781
    %v1783 = vsel %vm609, %v1713, %v1782
    %v1784 = vsel %vm611, %v1715, %v1783
    %v1785 = vsel %vm600, %v1719, %v1717
    %v1786 = vsel %vm601, %v1721, %v1785
    %v1787 = vsel %vm603, %v1723, %v1786
    %v1788 = vsel %vm605, %v1725, %v1787
    %v1789 = vsel %vm607, %v1727, %v1788
    %v1790 = vsel %vm609, %v1729, %v1789
    %v1791 = vsel %vm611, %v1731, %v1790
    %1796 = vst.msk [vmem:[#allocation5] sm:$0xff] %vm40, %v1770
    %1797 = vst.msk [vmem:[#allocation5 + $0x8] sm:$0xff] %vm40, %v1777
    %1798 = vst.msk [vmem:[#allocation5 + $0x10] sm:$0xff] %vm40, %v1784
    %1799 = vst.msk [vmem:[#allocation5 + $0x18] sm:$0xff] %vm40, %v1791
    // Predicated region
    $region22: #{tpu_custom_call.1} parent=1 // pred_check
      _
    $region23: #{tpu_custom_call.1} parent=1 // pred_check_branch
      %1801 = sbr.rel (0) target = $region25
    $region24: #{tpu_custom_call.1} parent=1 // pred_region
      %s1803 = ssub.s32 512, 512
      %1804 = vsyncadd [#allocation4], %s1803
      %s1805 = sshll.u32 [#allocation5], 4
      %s1806 = int_to_ptr.vmem [resolvable:$true] %s1805
      %1811 = dma.vmem_to_hbm [thread:$0]  %s1806, 512, %s4, [#allocation4], 128, 128, 8
    $region25: #{tpu_custom_call.1} parent=1 // pred_fallthru
      _
    // Predicated region
    $region26: #{tpu_custom_call.1} parent=1 // pred_check
      _
    $region27: #{tpu_custom_call.1} parent=1 // pred_check_branch
      %1813 = sbr.rel (0) target = $region29
    $region28: #{tpu_custom_call.1} parent=1 // pred_region
      %1814 = dma.done [#allocation4], 512
    $region29: #{tpu_custom_call.1} parent=1 // pred_fallthru
      _
    %1815 = vsyncpa [#allocation3], 1
    %1816 = vsyncpa [#allocation4], 1

</llo_original>
